<compile_context>
chip_gen: v7x
topology: tpu7x:2x2x1
jax: 0.10.0
libtpu: 0.0.40
codegen_flags: <defaults>
</compile_context>

<pallas_src>
import jax
import jax.numpy as jnp
from jax.experimental import pallas as pl
from jax.experimental.pallas import tpu as pltpu

_LANE = 128
_SUBLANE = 8


def _round_up(n, m):
    return pl.cdiv(n, m) * m


def _fourier_kernel_transposed(x_ref, w_ref, c_ref, out_ref):
    # x_ref:   (channels, batch_tile)   -- batch on the lane axis
    # w_ref:   (half, channels)         -- B transposed (VMEM-resident)
    # c_ref:   (half, 1)                -- bias, broadcasts over lanes
    # out_ref: (mapping_size, batch_tile)
    z = jnp.dot(w_ref[...], x_ref[...], preferred_element_type=jnp.float32)
    z = z + c_ref[...]
    half = z.shape[0]
    # Full-lane-width row-band stores (no masked partial stores).
    out_ref[:half, :] = jnp.sin(z).astype(out_ref.dtype)
    out_ref[half:, :] = (1.0 - jnp.cos(z)).astype(out_ref.dtype)


def _fourier_kernel_natural(x_ref, b_ref, c_ref, out_ref):
    # x_ref:   (batch_tile, channels)
    # b_ref:   (channels, half)         -- VMEM-resident
    # c_ref:   (1, half)
    # out_ref: (batch_tile, mapping_size);  half % 128 == 0 so both column
    #          bands below are lane-aligned stores.
    z = jnp.dot(x_ref[...], b_ref[...], preferred_element_type=jnp.float32)
    z = z + c_ref[...]
    half = z.shape[1]
    out_ref[:, :half] = jnp.sin(z).astype(out_ref.dtype)
    out_ref[:, half:] = (1.0 - jnp.cos(z)).astype(out_ref.dtype)


def fourier_features(x, B, c, *, batch_tile=None, out_dtype=None):
    """Pallas equivalent of FourierFeatures.forward.

    x: [batch, channels] float32
    B: [channels, mapping_size // 2] float32
    c: [mapping_size // 2] float32
    returns: [batch, mapping_size]; columns [0, M/2) = sin(x@B + c),
             columns [M/2, M) = 1 - cos(x@B + c).
    """
    assert x.ndim == 2, f"Expected 2D input (got {x.ndim}D input)"
    batch, channels = x.shape
    assert B.shape[0] == channels, (
        f"Expected input to have {B.shape[0]} channels (got {channels} channels)")
    half = B.shape[1]
    mapping_size = 2 * half
    assert c.shape == (half,)

    if out_dtype is None:
        out_dtype = x.dtype

    # Natural layout is strictly better (no wrapper transposes, all stores
    # lane-dense) whenever both output halves are lane-aligned.
    natural = (half % _LANE == 0)
    align = _SUBLANE if natural else _LANE

    if batch_tile is None:
        batch_tile = 512                      # ~85% of HBM roofline per-step
    batch_tile = _round_up(min(batch_tile, _round_up(batch, align)), align)

    padded = _round_up(batch, batch_tile)
    if padded != batch:
        x = jnp.pad(x, ((0, padded - batch), (0, 0)))
    grid = (padded // batch_tile,)

    if natural:
        y = pl.pallas_call(
            _fourier_kernel_natural,
            out_shape=jax.ShapeDtypeStruct((padded, mapping_size), out_dtype),
            grid_spec=pltpu.PrefetchScalarGridSpec(
                num_scalar_prefetch=0,
                grid=grid,
                in_specs=[
                    # x tile slides along the batch (sublane) axis.
                    pl.BlockSpec((batch_tile, channels), lambda i: (i, 0)),
                    # Weights / bias: constant block -> DMA'd once, VMEM-resident.
                    pl.BlockSpec((channels, half), lambda i: (0, 0)),
                    pl.BlockSpec((1, half), lambda i: (0, 0)),
                ],
                out_specs=pl.BlockSpec((batch_tile, mapping_size),
                                       lambda i: (i, 0)),
            ),
            compiler_params=pltpu.CompilerParams(
                dimension_semantics=("parallel",)),
        )(x, B, c.reshape(1, half))
    else:
        # Wrapper-side layout plumbing: batch goes to the lane axis in-kernel.
        x_t = x.T                      # (channels, padded)
        w = B.T                        # (half, channels)
        c2d = c.reshape(half, 1)       # (half, 1)

        y_t = pl.pallas_call(
            _fourier_kernel_transposed,
            out_shape=jax.ShapeDtypeStruct((mapping_size, padded), out_dtype),
            grid_spec=pltpu.PrefetchScalarGridSpec(
                num_scalar_prefetch=0,
                grid=grid,
                in_specs=[
                    # x tile slides along the batch (lane) axis.
                    pl.BlockSpec((channels, batch_tile), lambda i: (0, i)),
                    # Weights / bias: constant block -> DMA'd once, VMEM-resident.
                    pl.BlockSpec((half, channels), lambda i: (0, 0)),
                    pl.BlockSpec((half, 1), lambda i: (0, 0)),
                ],
                out_specs=pl.BlockSpec((mapping_size, batch_tile),
                                       lambda i: (0, i)),
            ),
            compiler_params=pltpu.CompilerParams(
                dimension_semantics=("parallel",)),
        )(x_t, w, c2d)
        y = y_t.T

    return y[:batch] if padded != batch else y


def _reference(x, B, c):
    z = x @ B + c
    return jnp.concatenate([jnp.sin(z), 1.0 - jnp.cos(z)], axis=1)


if __name__ == "__main__":
    key = jax.random.PRNGKey(0)
    kx, kb, kc, kb2, kc2, kx3 = jax.random.split(key, 6)

    channels = 16
    scale = 1.0

    # --- Config 1: typical module config (mapping_size=64) -> transposed path.
    batch, mapping_size = 256, 64
    x = jax.random.normal(kx, (batch, channels), dtype=jnp.float32)
    B = jax.random.normal(kb, (channels, mapping_size // 2), dtype=jnp.float32) * scale
    c = jax.random.normal(kc, (mapping_size // 2,), dtype=jnp.float32) * scale

    y = jax.block_until_ready(fourier_features(x, B, c))
    assert y.shape == (batch, mapping_size)
    assert jnp.allclose(y, _reference(x, B, c), atol=1e-5, rtol=1e-5)

    # --- Config 2: lane-aligned mapping_size=256 -> natural path (no transposes).
    mapping_size2 = 256
    B2 = jax.random.normal(kb2, (channels, mapping_size2 // 2), dtype=jnp.float32) * scale
    c2 = jax.random.normal(kc2, (mapping_size2 // 2,), dtype=jnp.float32) * scale

    y2 = jax.block_until_ready(fourier_features(x, B2, c2))
    assert y2.shape == (batch, mapping_size2)
    assert jnp.allclose(y2, _reference(x, B2, c2), atol=1e-5, rtol=1e-5)

    # --- Config 3: ragged batch (exercises the pad/slice path), mapping_size=64.
    batch3 = 200
    x3 = jax.random.normal(kx3, (batch3, channels), dtype=jnp.float32)
    y3 = jax.block_until_ready(fourier_features(x3, B, c))
    assert y3.shape == (batch3, mapping_size)
    assert jnp.allclose(y3, _reference(x3, B, c), atol=1e-5, rtol=1e-5)

    print("KERNEL_OK")
</pallas_src>

<mosaic_0001>
module attributes {stable_mosaic.version = 11 : i64} {
  func.func @_fourier_kernel_transposed(%arg0: i32, %arg1: memref<16x256xf32, #tpu.memory_space<vmem>>, %arg2: memref<32x16xf32, #tpu.memory_space<vmem>>, %arg3: memref<32x1xf32, #tpu.memory_space<vmem>>, %arg4: memref<64x256xf32, #tpu.memory_space<vmem>>) attributes {dimension_semantics = [#tpu.dimension_semantics<parallel>], iteration_bounds = array<i64: 1>, scalar_prefetch = 0 : i64, scratch_operands = 0 : i64, tpu.core_type = #tpu.core_type<tc>, window_params = [{transform_indices = @transform_0, window_bounds = array<i64: 16, 256>}, {pipeline_mode = #tpu.pipeline_mode<synchronous>, transform_indices = @transform_1, window_bounds = array<i64: 32, 16>}, {pipeline_mode = #tpu.pipeline_mode<synchronous>, transform_indices = @transform_2, window_bounds = array<i64: 32, 1>}, {transform_indices = @transform_3, window_bounds = array<i64: 64, 256>}]} {
    %c0 = arith.constant 0 : index
    %c0_0 = arith.constant 0 : index
    %0 = vector.load %arg2[%c0, %c0_0] : memref<32x16xf32, #tpu.memory_space<vmem>>, vector<32x16xf32>
    %c0_1 = arith.constant 0 : index
    %c0_2 = arith.constant 0 : index
    %1 = vector.load %arg1[%c0_1, %c0_2] : memref<16x256xf32, #tpu.memory_space<vmem>>, vector<16x256xf32>
    %cst = arith.constant dense<0.000000e+00> : vector<32x256xf32>
    %2 = tpu.matmul %0, %1, %cst {dimension_numbers = #tpu.dot_dimension_numbers<[1], [0], [0], [1], [0, 0, 1, 1], [], []>} : vector<32x16xf32>, vector<16x256xf32>, vector<32x256xf32> -> vector<32x256xf32>
    %c0_3 = arith.constant 0 : index
    %c0_4 = arith.constant 0 : index
    %3 = vector.load %arg3[%c0_3, %c0_4] : memref<32x1xf32, #tpu.memory_space<vmem>>, vector<32x1xf32>
    %4 = vector.broadcast %3 : vector<32x1xf32> to vector<32x256xf32>
    %5 = arith.addf %2, %4 : vector<32x256xf32>
    %6 = math.sin %5 : vector<32x256xf32>
    %c0_5 = arith.constant 0 : index
    %c0_6 = arith.constant 0 : index
    %7 = vector.load %arg4[%c0_5, %c0_6] : memref<64x256xf32, #tpu.memory_space<vmem>>, vector<32x256xf32>
    tpu.vector_store %arg4[%c0_5, %c0_6], %6 {strides = array<i32>} : memref<64x256xf32, #tpu.memory_space<vmem>>, vector<32x256xf32>,
    %8 = math.cos %5 : vector<32x256xf32>
    %cst_7 = arith.constant 1.000000e+00 : f32
    %9 = vector.broadcast %cst_7 : f32 to vector<32x256xf32>
    %10 = arith.subf %9, %8 : vector<32x256xf32>
    %c32 = arith.constant 32 : index
    %c0_8 = arith.constant 0 : index
    %11 = vector.load %arg4[%c32, %c0_8] : memref<64x256xf32, #tpu.memory_space<vmem>>, vector<32x256xf32>
    tpu.vector_store %arg4[%c32, %c0_8], %10 {strides = array<i32>} : memref<64x256xf32, #tpu.memory_space<vmem>>, vector<32x256xf32>,
    return
  }
  func.func @transform_0(%arg0: i32) -> (i32, i32) {
    %c0_i32 = arith.constant 0 : i32
    %c0_i32_0 = arith.constant 0 : i32
    return %c0_i32, %arg0 : i32, i32
  }
  func.func @transform_1(%arg0: i32) -> (i32, i32) {
    %c0_i32 = arith.constant 0 : i32
    %c0_i32_0 = arith.constant 0 : i32
    %c0_i32_1 = arith.constant 0 : i32
    return %c0_i32, %c0_i32_0 : i32, i32
  }
  func.func @transform_2(%arg0: i32) -> (i32, i32) {
    %c0_i32 = arith.constant 0 : i32
    %c0_i32_0 = arith.constant 0 : i32
    %c0_i32_1 = arith.constant 0 : i32
    return %c0_i32, %c0_i32_0 : i32, i32
  }
  func.func @transform_3(%arg0: i32) -> (i32, i32) {
    %c0_i32 = arith.constant 0 : i32
    %c0_i32_0 = arith.constant 0 : i32
    return %c0_i32, %arg0 : i32, i32
  }
}

</mosaic_0001>

<llo_original>
// kernel: tpu_custom_call.1
$region0: #{tpu_custom_call.1}
  #allocation0 [shape = 'u32[]', space=smem, size = 0x4, offset = 0x4, fixed_abs, tag = 'smem constant byte address 0x4 - core index']
  #allocation1 [shape = 'u32[144,128]{1,0:T(1,128)}', space=vmem, size = 0x12000, scoped, tag = 'internal scratch']
  %s0 = inlined_call_operand.vmem [shape: f32[16,256], index: 0, kind: input, shape index: {}]
  %s1 = inlined_call_operand.vmem [shape: f32[32,16], index: 1, kind: input, shape index: {}]
  %s2 = inlined_call_operand.vmem [shape: f32[32,1], index: 2, kind: input, shape index: {}]
  %s3 = inlined_call_operand.hbm [shape: f32[64,256], index: 3, kind: output, shape index: {}]
  %s4 = sld [smem:[#allocation0]]
  $region22: #{tpu_custom_call.1} parent=0
    _
  %s6 = ssub.s32 1, %s4
  %s7 = scalar_select 0, %s6, %s4
  $region1: #{tpu_custom_call.1} parent=0
    #allocation2 [shape = 'u8[65536]{0}', space=vmem, size = 0x10000, scoped, tag = 'output window, operand 0, single buffered']
    #allocation3 [shape = 's32[1]{0}', space=sflag, size = 0x4, scoped, tag = 'scoped memory for tpu_custom_call.1']
    %8 = vsyncpa [#allocation3], 0
    // Predicated region
    $region2: #{tpu_custom_call.1} parent=1 // pred_check
      _
    $region3: #{tpu_custom_call.1} parent=1 // pred_check_branch
      %10 = sbr.rel (0) target = $region5
    $region4: #{tpu_custom_call.1} parent=1 // pred_region
      _
    $region5: #{tpu_custom_call.1} parent=1 // pred_fallthru
      _
    // Predicated region
    $region6: #{tpu_custom_call.1} parent=1 // pred_check
      _
    $region7: #{tpu_custom_call.1} parent=1 // pred_check_branch
      %12 = sbr.rel (0) target = $region9
    $region8: #{tpu_custom_call.1} parent=1 // pred_region
      _
    $region9: #{tpu_custom_call.1} parent=1 // pred_fallthru
      _
    // Predicated region
    $region10: #{tpu_custom_call.1} parent=1 // pred_check
      _
    $region11: #{tpu_custom_call.1} parent=1 // pred_check_branch
      %14 = sbr.rel (0) target = $region13
    $region12: #{tpu_custom_call.1} parent=1 // pred_region
      _
    $region13: #{tpu_custom_call.1} parent=1 // pred_fallthru
      _
    %v15 = vld [vmem:[%s1] sm:$0xff]
    %v16 = vld [vmem:[%s1 + $0x8] sm:$0xff]
    %v17 = vld [vmem:[%s1 + $0x10] sm:$0xff]
    %v18 = vld [vmem:[%s1 + $0x18] sm:$0xff]
    %v19 = vld [vmem:[%s0] sm:$0xff]
    %v20 = vld [vmem:[%s0 + $0x8] sm:$0xff]
    %v21 = vld [vmem:[%s0 + $0x10] sm:$0xff]
    %v22 = vld [vmem:[%s0 + $0x18] sm:$0xff]
    %v23 = vld [vmem:[%s2] sm:$0xff]
    %v24 = vld [vmem:[%s2 + $0x8] sm:$0xff]
    %v25 = vld [vmem:[%s2 + $0x10] sm:$0xff]
    %v26 = vld [vmem:[%s2 + $0x18] sm:$0xff]
    %28 = vset.pattern.permute.xlu0 0
    %29 = vperm.xlu0 %28, %v23
    %v30 = vpop.permute.xlu0 %29
    %33 = vset.pattern.permute.xlu0 0
    %34 = vperm.xlu0 %33, %v24
    %v35 = vpop.permute.xlu0 %34
    %38 = vset.pattern.permute.xlu0 0
    %39 = vperm.xlu0 %38, %v25
    %v40 = vpop.permute.xlu0 %39
    %43 = vset.pattern.permute.xlu0 0
    %44 = vperm.xlu0 %43, %v26
    %v45 = vpop.permute.xlu0 %44
    %vm47 = vcmask 130048
    %v49 = vsel %vm47, %v15, 0
    %v52 = vsel %vm47, %v16, 0
    %v55 = vsel %vm47, %v17, 0
    %v58 = vsel %vm47, %v18, 0
    %60 = vmatprep.subr.mxu0 %v20
    %61 = vmatpush1.msra.mxu0 %v19
    %62 = vmatprep.subr.mxu0 %v22
    %63 = vmatpush1.msra.mxu0 %v21
    %64 = vmatprep.subr.mxu0 0.0
    %65 = vmatpush1.msra.mxu0 0.0
    %66 = vmatprep.subr.mxu0 0.0
    %67 = vmatpush1.msra.mxu0 0.0
    %68 = vmatprep.subr.mxu0 0.0
    %69 = vmatpush1.msra.mxu0 0.0
    %70 = vmatprep.subr.mxu0 0.0
    %71 = vmatpush1.msra.mxu0 0.0
    %72 = vmatprep.subr.mxu0 0.0
    %73 = vmatpush1.msra.mxu0 0.0
    %74 = vmatprep.subr.mxu0 0.0
    %75 = vmatpush1.msra.mxu0 0.0
    %76 = vmatprep.subr.mxu0 0.0
    %77 = vmatpush1.msra.mxu0 0.0
    %78 = vmatprep.subr.mxu0 0.0
    %79 = vmatpush1.msra.mxu0 0.0
    %80 = vmatprep.subr.mxu0 0.0
    %81 = vmatpush1.msra.mxu0 0.0
    %82 = vmatprep.subr.mxu0 0.0
    %83 = vmatpush1.msra.mxu0 0.0
    %84 = vmatprep.subr.mxu0 0.0
    %85 = vmatpush1.msra.mxu0 0.0
    %86 = vmatprep.subr.mxu0 0.0
    %87 = vmatpush1.msra.mxu0 0.0
    %88 = vmatprep.subr.mxu0 0.0
    %89 = vmatpush1.msra.mxu0 0.0
    %90 = vmatprep.subr.mxu0 0.0
    %91 = vmatpush1.msra.mxu0 0.0
    %92 = vmatprep.subr.mxu0 0.0
    %93 = vmatpush1.msra.mxu0 0.0
    %94 = vmatprep.subr.mxu0 0.0
    %95 = vmatpush1.msra.mxu0 0.0
    %96 = vmatprep.subr.mxu0 0.0
    %97 = vmatpush1.msra.mxu0 0.0
    %98 = vmatprep.subr.mxu0 0.0
    %99 = vmatpush1.msra.mxu0 0.0
    %100 = vmatprep.subr.mxu0 0.0
    %101 = vmatpush1.msra.mxu0 0.0
    %102 = vmatprep.subr.mxu0 0.0
    %103 = vmatpush1.msra.mxu0 0.0
    %104 = vmatprep.subr.mxu0 0.0
    %105 = vmatpush1.msra.mxu0 0.0
    %106 = vmatprep.subr.mxu0 0.0
    %107 = vmatpush1.msra.mxu0 0.0
    %108 = vmatprep.subr.mxu0 0.0
    %109 = vmatpush1.msra.mxu0 0.0
    %110 = vmatprep.subr.mxu0 0.0
    %111 = vmatpush1.msra.mxu0 0.0
    %112 = vmatprep.subr.mxu0 0.0
    %113 = vmatpush1.msra.mxu0 0.0
    %114 = vmatprep.subr.mxu0 0.0
    %115 = vmatpush1.msra.mxu0 0.0
    %116 = vmatprep.subr.mxu0 0.0
    %117 = vmatpush1.msra.mxu0 0.0
    %118 = vmatprep.subr.mxu0 0.0
    %119 = vmatpush1.msra.mxu0 0.0
    %120 = vmatprep.subr.mxu0 0.0
    %121 = vmatpush1.msra.mxu0 0.0
    %122 = vmatprep.subr.mxu0 0.0
    %123 = vmatpush1.msra.mxu0 0.0
    %124 = vmatprep.mubr.f32.mxu0 0.0
    %125 = vmatmul.mubr.f32.gmra.mrb[0].mxu0 %v49
    %v126 = vpop.f32.mrb[0].mxu0
    %v127 = vadd.f32 %v30, %v126
    %v128 = vpop.f32.mrb[0].mxu0
    %v129 = vadd.f32 %v30, %v128
    %130 = vmatprep.mubr.f32.mxu0 0.0
    %131 = vmatmul.mubr.f32.gmra.mrb[0].mxu0 %v52
    %v132 = vpop.f32.mrb[0].mxu0
    %v133 = vadd.f32 %v35, %v132
    %v134 = vpop.f32.mrb[0].mxu0
    %v135 = vadd.f32 %v35, %v134
    %136 = vmatprep.mubr.f32.mxu0 0.0
    %137 = vmatmul.mubr.f32.gmra.mrb[0].mxu0 %v55
    %v138 = vpop.f32.mrb[0].mxu0
    %v139 = vadd.f32 %v40, %v138
    %v140 = vpop.f32.mrb[0].mxu0
    %v141 = vadd.f32 %v40, %v140
    %142 = vmatprep.mubr.f32.mxu0 0.0
    %143 = vmatmul.mubr.f32.gmra.mrb[0].mxu0 %v58
    %v144 = vpop.f32.mrb[0].mxu0
    %v145 = vadd.f32 %v45, %v144
    %v146 = vpop.f32.mrb[0].mxu0
    %v147 = vadd.f32 %v45, %v146
    %148 = vdwg.mxu0
    %v149 = vand.u32 2147483647, %v127
    %vm150 = vcmp.le.f32.partialorder %v149, 0.7853982
    %vm151 = vcmp.lt.s32.totalorder %v127, 0
    %v152 = vand.u32 %v127, 2139095040
    %v153 = vshrl.u32 %v152, 23
    %v154 = vsub.s32 %v153, 127
    %v155 = vand.u32 2147483647, %v127
    %v156 = vand.u32 %v155, 8388607
    %v157 = vor.u32 %v156, 8388608
    %v158 = vsub.s32 0, %v157
    %v159 = vadd.s32 %v154, 1
    %vm160 = vcmp.gt.s32.totalorder %v159, 0
    %v161 = vsel %vm160, %v159, 0
    %v162 = vshrl.u32 %v161, 5
    %v163 = vand.u32 %v161, 31
    %v164 = vsub.s32 32, %v163
    %v165 = vshrl.u32 683565275, %v164
    %v166 = vshll.u32 683565275, %v163
    %v167 = vshrl.u32 2475754826, %v164
    %v168 = vor.u32 %v166, %v167
    %v169 = vshll.u32 2475754826, %v163
    %v170 = vshrl.u32 2131351028, %v164
    %v171 = vor.u32 %v169, %v170
    %v172 = vshll.u32 2131351028, %v163
    %v173 = vshrl.u32 2102212464, %v164
    %v174 = vor.u32 %v172, %v173
    %v175 = vshll.u32 2102212464, %v163
    %v176 = vshrl.u32 920167782, %v164
    %v177 = vor.u32 %v175, %v176
    %v178 = vshll.u32 920167782, %v163
    %v179 = vshrl.u32 1326507024, %v164
    %v180 = vor.u32 %v178, %v179
    %vm181 = vcmp.lt.s32.totalorder %v162, 1
    %vm182 = vcmp.lt.s32.totalorder %v162, 2
    %vm183 = vcmp.lt.s32.totalorder %v162, 3
    %vm184 = vcmp.lt.s32.totalorder %v162, 4
    %v185 = vsel %vm181, %v165, %v168
    %v186 = vsel %vm184, %v174, 2102212464
    %v187 = vsel %vm183, %v171, %v186
    %v188 = vsel %vm182, %v185, %v187
    %v189 = vsel %vm181, %v168, %v171
    %v190 = vsel %vm184, %v177, 920167782
    %v191 = vsel %vm183, %v174, %v190
    %v192 = vsel %vm182, %v189, %v191
    %v193 = vsel %vm181, %v171, %v174
    %v194 = vsel %vm184, %v180, 1326507024
    %v195 = vsel %vm183, %v177, %v194
    %v196 = vsel %vm182, %v193, %v195
    %v197 = vshll.u32 %v157, 8
    %v198 = vmul.u32.u64.compose %v197, %v196
    %v199 = vextract.low.u32 %v198
    %v200 = vextract.high.u32 %v198
    %v201 = vmul.u32.u64.compose %v197, %v192
    %v202 = vextract.low.u32 %v201
    %v203 = vextract.high.u32 %v201
    %v204 = vmul.u32 %v197, %v188
    %v205 = vadd.s32 %v200, %v202
    %vm206 = vc.u32 %v200, %v202
    %v207 = vadd.s32 %v203, 1
    %v208 = vsel %vm206, %v207, %v203
    %v209 = vadd.s32 %v204, %v208
    %v210 = vadd.s32 %v209, 536870912
    %v211 = vshrl.u32 %v210, 30
    %v212 = vshll.u32 %v211, 30
    %v213 = vsub.s32 %v209, %v212
    %vm214 = vcmp.lt.s32.totalorder %v213, 0
    %v215 = vsub.s32 0, %v213
    %v216 = vsel %vm214, %v215, %v213
    %v217 = vclz %v216
    %v218 = vsub.s32 %v217, 2
    %vm219 = vcmp.gt.s32.totalorder 0, %v218
    %v220 = vsel %vm219, 0, %v218
    %v221 = vsub.s32 32, %v220
    %v222 = vshll.u32 %v213, %v220
    %v223 = vshrl.u32 %v205, %v221
    %v224 = vor.u32 %v222, %v223
    %v225 = vsub.s32 4294967266, %v220
    %v226 = vadd.s32 %v225, 127
    %v227 = vshll.u32 %v226, 23
    %v228 = vor.u32 4788187, %v227
    %v229 = vand.u32 2147483647, %v228
    %v231 = vcvt.s32.f32 %v224
    %v232 = vmul.f32 %v231, %v229
    %v233 = vxor.u32 %v232, 2147483648
    %v234 = vsel %vm151, %v233, %v232
    %v235 = vsub.s32 4, %v211
    %v236 = vsel %vm151, %v235, %v211
    %v237 = vsel %vm150, %v127, %v234
    %v238 = vsel %vm150, 0, %v236
    %v239 = vcosq.f32.pop %v237
    %v240 = vsinq.f32.pop %v237
    %vm241 = vweird.f32 %v127
    %v242 = vadd.s32 %v238, 3
    %v243 = vand.u32 %v242, 3
    %vm244 = vcmp.lt.s32.totalorder %v243, 2
    %vm245 = vcmp.eq.s32.totalorder %v243, 0
    %v246 = vxor.u32 %v240, 2147483648
    %v247 = vsel %vm245, %v239, %v246
    %vm248 = vcmp.eq.s32.totalorder %v243, 2
    %v249 = vxor.u32 %v239, 2147483648
    %v250 = vsel %vm248, %v249, %v240
    %v251 = vsel %vm244, %v247, %v250
    %v252 = vsel %vm241, nan, %v251
    %v253 = vand.u32 2147483647, %v129
    %vm254 = vcmp.le.f32.partialorder %v253, 0.7853982
    %vm255 = vcmp.lt.s32.totalorder %v129, 0
    %v256 = vand.u32 %v129, 2139095040
    %v257 = vshrl.u32 %v256, 23
    %v258 = vsub.s32 %v257, 127
    %v259 = vand.u32 2147483647, %v129
    %v260 = vand.u32 %v259, 8388607
    %v261 = vor.u32 %v260, 8388608
    %v262 = vsub.s32 0, %v261
    %v263 = vadd.s32 %v258, 1
    %vm264 = vcmp.gt.s32.totalorder %v263, 0
    %v265 = vsel %vm264, %v263, 0
    %v266 = vshrl.u32 %v265, 5
    %v267 = vand.u32 %v265, 31
    %v268 = vsub.s32 32, %v267
    %v269 = vshrl.u32 683565275, %v268
    %v270 = vshll.u32 683565275, %v267
    %v271 = vshrl.u32 2475754826, %v268
    %v272 = vor.u32 %v270, %v271
    %v273 = vshll.u32 2475754826, %v267
    %v274 = vshrl.u32 2131351028, %v268
    %v275 = vor.u32 %v273, %v274
    %v276 = vshll.u32 2131351028, %v267
    %v277 = vshrl.u32 2102212464, %v268
    %v278 = vor.u32 %v276, %v277
    %v279 = vshll.u32 2102212464, %v267
    %v280 = vshrl.u32 920167782, %v268
    %v281 = vor.u32 %v279, %v280
    %v282 = vshll.u32 920167782, %v267
    %v283 = vshrl.u32 1326507024, %v268
    %v284 = vor.u32 %v282, %v283
    %vm285 = vcmp.lt.s32.totalorder %v266, 1
    %vm286 = vcmp.lt.s32.totalorder %v266, 2
    %vm287 = vcmp.lt.s32.totalorder %v266, 3
    %vm288 = vcmp.lt.s32.totalorder %v266, 4
    %v289 = vsel %vm285, %v269, %v272
    %v290 = vsel %vm288, %v278, 2102212464
    %v291 = vsel %vm287, %v275, %v290
    %v292 = vsel %vm286, %v289, %v291
    %v293 = vsel %vm285, %v272, %v275
    %v294 = vsel %vm288, %v281, 920167782
    %v295 = vsel %vm287, %v278, %v294
    %v296 = vsel %vm286, %v293, %v295
    %v297 = vsel %vm285, %v275, %v278
    %v298 = vsel %vm288, %v284, 1326507024
    %v299 = vsel %vm287, %v281, %v298
    %v300 = vsel %vm286, %v297, %v299
    %v301 = vshll.u32 %v261, 8
    %v302 = vmul.u32.u64.compose %v301, %v300
    %v303 = vextract.low.u32 %v302
    %v304 = vextract.high.u32 %v302
    %v305 = vmul.u32.u64.compose %v301, %v296
    %v306 = vextract.low.u32 %v305
    %v307 = vextract.high.u32 %v305
    %v308 = vmul.u32 %v301, %v292
    %v309 = vadd.s32 %v304, %v306
    %vm310 = vc.u32 %v304, %v306
    %v311 = vadd.s32 %v307, 1
    %v312 = vsel %vm310, %v311, %v307
    %v313 = vadd.s32 %v308, %v312
    %v314 = vadd.s32 %v313, 536870912
    %v315 = vshrl.u32 %v314, 30
    %v316 = vshll.u32 %v315, 30
    %v317 = vsub.s32 %v313, %v316
    %vm318 = vcmp.lt.s32.totalorder %v317, 0
    %v319 = vsub.s32 0, %v317
    %v320 = vsel %vm318, %v319, %v317
    %v321 = vclz %v320
    %v322 = vsub.s32 %v321, 2
    %vm323 = vcmp.gt.s32.totalorder 0, %v322
    %v324 = vsel %vm323, 0, %v322
    %v325 = vsub.s32 32, %v324
    %v326 = vshll.u32 %v317, %v324
    %v327 = vshrl.u32 %v309, %v325
    %v328 = vor.u32 %v326, %v327
    %v329 = vsub.s32 4294967266, %v324
    %v330 = vadd.s32 %v329, 127
    %v331 = vshll.u32 %v330, 23
    %v332 = vor.u32 4788187, %v331
    %v333 = vand.u32 2147483647, %v332
    %v335 = vcvt.s32.f32 %v328
    %v336 = vmul.f32 %v335, %v333
    %v337 = vxor.u32 %v336, 2147483648
    %v338 = vsel %vm255, %v337, %v336
    %v339 = vsub.s32 4, %v315
    %v340 = vsel %vm255, %v339, %v315
    %v341 = vsel %vm254, %v129, %v338
    %v342 = vsel %vm254, 0, %v340
    %v343 = vcosq.f32.pop %v341
    %v344 = vsinq.f32.pop %v341
    %vm345 = vweird.f32 %v129
    %v346 = vadd.s32 %v342, 3
    %v347 = vand.u32 %v346, 3
    %vm348 = vcmp.lt.s32.totalorder %v347, 2
    %vm349 = vcmp.eq.s32.totalorder %v347, 0
    %v350 = vxor.u32 %v344, 2147483648
    %v351 = vsel %vm349, %v343, %v350
    %vm352 = vcmp.eq.s32.totalorder %v347, 2
    %v353 = vxor.u32 %v343, 2147483648
    %v354 = vsel %vm352, %v353, %v344
    %v355 = vsel %vm348, %v351, %v354
    %v356 = vsel %vm345, nan, %v355
    %v357 = vand.u32 2147483647, %v133
    %vm358 = vcmp.le.f32.partialorder %v357, 0.7853982
    %vm359 = vcmp.lt.s32.totalorder %v133, 0
    %v360 = vand.u32 %v133, 2139095040
    %v361 = vshrl.u32 %v360, 23
    %v362 = vsub.s32 %v361, 127
    %v363 = vand.u32 2147483647, %v133
    %v364 = vand.u32 %v363, 8388607
    %v365 = vor.u32 %v364, 8388608
    %v366 = vsub.s32 0, %v365
    %v367 = vadd.s32 %v362, 1
    %vm368 = vcmp.gt.s32.totalorder %v367, 0
    %v369 = vsel %vm368, %v367, 0
    %v370 = vshrl.u32 %v369, 5
    %v371 = vand.u32 %v369, 31
    %v372 = vsub.s32 32, %v371
    %v373 = vshrl.u32 683565275, %v372
    %v374 = vshll.u32 683565275, %v371
    %v375 = vshrl.u32 2475754826, %v372
    %v376 = vor.u32 %v374, %v375
    %v377 = vshll.u32 2475754826, %v371
    %v378 = vshrl.u32 2131351028, %v372
    %v379 = vor.u32 %v377, %v378
    %v380 = vshll.u32 2131351028, %v371
    %v381 = vshrl.u32 2102212464, %v372
    %v382 = vor.u32 %v380, %v381
    %v383 = vshll.u32 2102212464, %v371
    %v384 = vshrl.u32 920167782, %v372
    %v385 = vor.u32 %v383, %v384
    %v386 = vshll.u32 920167782, %v371
    %v387 = vshrl.u32 1326507024, %v372
    %v388 = vor.u32 %v386, %v387
    %vm389 = vcmp.lt.s32.totalorder %v370, 1
    %vm390 = vcmp.lt.s32.totalorder %v370, 2
    %vm391 = vcmp.lt.s32.totalorder %v370, 3
    %vm392 = vcmp.lt.s32.totalorder %v370, 4
    %v393 = vsel %vm389, %v373, %v376
    %v394 = vsel %vm392, %v382, 2102212464
    %v395 = vsel %vm391, %v379, %v394
    %v396 = vsel %vm390, %v393, %v395
    %v397 = vsel %vm389, %v376, %v379
    %v398 = vsel %vm392, %v385, 920167782
    %v399 = vsel %vm391, %v382, %v398
    %v400 = vsel %vm390, %v397, %v399
    %v401 = vsel %vm389, %v379, %v382
    %v402 = vsel %vm392, %v388, 1326507024
    %v403 = vsel %vm391, %v385, %v402
    %v404 = vsel %vm390, %v401, %v403
    %v405 = vshll.u32 %v365, 8
    %v406 = vmul.u32.u64.compose %v405, %v404
    %v407 = vextract.low.u32 %v406
    %v408 = vextract.high.u32 %v406
    %v409 = vmul.u32.u64.compose %v405, %v400
    %v410 = vextract.low.u32 %v409
    %v411 = vextract.high.u32 %v409
    %v412 = vmul.u32 %v405, %v396
    %v413 = vadd.s32 %v408, %v410
    %vm414 = vc.u32 %v408, %v410
    %v415 = vadd.s32 %v411, 1
    %v416 = vsel %vm414, %v415, %v411
    %v417 = vadd.s32 %v412, %v416
    %v418 = vadd.s32 %v417, 536870912
    %v419 = vshrl.u32 %v418, 30
    %v420 = vshll.u32 %v419, 30
    %v421 = vsub.s32 %v417, %v420
    %vm422 = vcmp.lt.s32.totalorder %v421, 0
    %v423 = vsub.s32 0, %v421
    %v424 = vsel %vm422, %v423, %v421
    %v425 = vclz %v424
    %v426 = vsub.s32 %v425, 2
    %vm427 = vcmp.gt.s32.totalorder 0, %v426
    %v428 = vsel %vm427, 0, %v426
    %v429 = vsub.s32 32, %v428
    %v430 = vshll.u32 %v421, %v428
    %v431 = vshrl.u32 %v413, %v429
    %v432 = vor.u32 %v430, %v431
    %v433 = vsub.s32 4294967266, %v428
    %v434 = vadd.s32 %v433, 127
    %v435 = vshll.u32 %v434, 23
    %v436 = vor.u32 4788187, %v435
    %v437 = vand.u32 2147483647, %v436
    %v439 = vcvt.s32.f32 %v432
    %v440 = vmul.f32 %v439, %v437
    %v441 = vxor.u32 %v440, 2147483648
    %v442 = vsel %vm359, %v441, %v440
    %v443 = vsub.s32 4, %v419
    %v444 = vsel %vm359, %v443, %v419
    %v445 = vsel %vm358, %v133, %v442
    %v446 = vsel %vm358, 0, %v444
    %v447 = vcosq.f32.pop %v445
    %v448 = vsinq.f32.pop %v445
    %vm449 = vweird.f32 %v133
    %v450 = vadd.s32 %v446, 3
    %v451 = vand.u32 %v450, 3
    %vm452 = vcmp.lt.s32.totalorder %v451, 2
    %vm453 = vcmp.eq.s32.totalorder %v451, 0
    %v454 = vxor.u32 %v448, 2147483648
    %v455 = vsel %vm453, %v447, %v454
    %vm456 = vcmp.eq.s32.totalorder %v451, 2
    %v457 = vxor.u32 %v447, 2147483648
    %v458 = vsel %vm456, %v457, %v448
    %v459 = vsel %vm452, %v455, %v458
    %v460 = vsel %vm449, nan, %v459
    %v461 = vand.u32 2147483647, %v135
    %vm462 = vcmp.le.f32.partialorder %v461, 0.7853982
    %vm463 = vcmp.lt.s32.totalorder %v135, 0
    %v464 = vand.u32 %v135, 2139095040
    %v465 = vshrl.u32 %v464, 23
    %v466 = vsub.s32 %v465, 127
    %v467 = vand.u32 2147483647, %v135
    %v468 = vand.u32 %v467, 8388607
    %v469 = vor.u32 %v468, 8388608
    %v470 = vsub.s32 0, %v469
    %v471 = vadd.s32 %v466, 1
    %vm472 = vcmp.gt.s32.totalorder %v471, 0
    %v473 = vsel %vm472, %v471, 0
    %v474 = vshrl.u32 %v473, 5
    %v475 = vand.u32 %v473, 31
    %v476 = vsub.s32 32, %v475
    %v477 = vshrl.u32 683565275, %v476
    %v478 = vshll.u32 683565275, %v475
    %v479 = vshrl.u32 2475754826, %v476
    %v480 = vor.u32 %v478, %v479
    %v481 = vshll.u32 2475754826, %v475
    %v482 = vshrl.u32 2131351028, %v476
    %v483 = vor.u32 %v481, %v482
    %v484 = vshll.u32 2131351028, %v475
    %v485 = vshrl.u32 2102212464, %v476
    %v486 = vor.u32 %v484, %v485
    %v487 = vshll.u32 2102212464, %v475
    %v488 = vshrl.u32 920167782, %v476
    %v489 = vor.u32 %v487, %v488
    %v490 = vshll.u32 920167782, %v475
    %v491 = vshrl.u32 1326507024, %v476
    %v492 = vor.u32 %v490, %v491
    %vm493 = vcmp.lt.s32.totalorder %v474, 1
    %vm494 = vcmp.lt.s32.totalorder %v474, 2
    %vm495 = vcmp.lt.s32.totalorder %v474, 3
    %vm496 = vcmp.lt.s32.totalorder %v474, 4
    %v497 = vsel %vm493, %v477, %v480
    %v498 = vsel %vm496, %v486, 2102212464
    %v499 = vsel %vm495, %v483, %v498
    %v500 = vsel %vm494, %v497, %v499
    %v501 = vsel %vm493, %v480, %v483
    %v502 = vsel %vm496, %v489, 920167782
    %v503 = vsel %vm495, %v486, %v502
    %v504 = vsel %vm494, %v501, %v503
    %v505 = vsel %vm493, %v483, %v486
    %v506 = vsel %vm496, %v492, 1326507024
    %v507 = vsel %vm495, %v489, %v506
    %v508 = vsel %vm494, %v505, %v507
    %v509 = vshll.u32 %v469, 8
    %v510 = vmul.u32.u64.compose %v509, %v508
    %v511 = vextract.low.u32 %v510
    %v512 = vextract.high.u32 %v510
    %v513 = vmul.u32.u64.compose %v509, %v504
    %v514 = vextract.low.u32 %v513
    %v515 = vextract.high.u32 %v513
    %v516 = vmul.u32 %v509, %v500
    %v517 = vadd.s32 %v512, %v514
    %vm518 = vc.u32 %v512, %v514
    %v519 = vadd.s32 %v515, 1
    %v520 = vsel %vm518, %v519, %v515
    %v521 = vadd.s32 %v516, %v520
    %v522 = vadd.s32 %v521, 536870912
    %v523 = vshrl.u32 %v522, 30
    %v524 = vshll.u32 %v523, 30
    %v525 = vsub.s32 %v521, %v524
    %vm526 = vcmp.lt.s32.totalorder %v525, 0
    %v527 = vsub.s32 0, %v525
    %v528 = vsel %vm526, %v527, %v525
    %v529 = vclz %v528
    %v530 = vsub.s32 %v529, 2
    %vm531 = vcmp.gt.s32.totalorder 0, %v530
    %v532 = vsel %vm531, 0, %v530
    %v533 = vsub.s32 32, %v532
    %v534 = vshll.u32 %v525, %v532
    %v535 = vshrl.u32 %v517, %v533
    %v536 = vor.u32 %v534, %v535
    %v537 = vsub.s32 4294967266, %v532
    %v538 = vadd.s32 %v537, 127
    %v539 = vshll.u32 %v538, 23
    %v540 = vor.u32 4788187, %v539
    %v541 = vand.u32 2147483647, %v540
    %v543 = vcvt.s32.f32 %v536
    %v544 = vmul.f32 %v543, %v541
    %v545 = vxor.u32 %v544, 2147483648
    %v546 = vsel %vm463, %v545, %v544
    %v547 = vsub.s32 4, %v523
    %v548 = vsel %vm463, %v547, %v523
    %v549 = vsel %vm462, %v135, %v546
    %v550 = vsel %vm462, 0, %v548
    %v551 = vcosq.f32.pop %v549
    %v552 = vsinq.f32.pop %v549
    %vm553 = vweird.f32 %v135
    %v554 = vadd.s32 %v550, 3
    %v555 = vand.u32 %v554, 3
    %vm556 = vcmp.lt.s32.totalorder %v555, 2
    %vm557 = vcmp.eq.s32.totalorder %v555, 0
    %v558 = vxor.u32 %v552, 2147483648
    %v559 = vsel %vm557, %v551, %v558
    %vm560 = vcmp.eq.s32.totalorder %v555, 2
    %v561 = vxor.u32 %v551, 2147483648
    %v562 = vsel %vm560, %v561, %v552
    %v563 = vsel %vm556, %v559, %v562
    %v564 = vsel %vm553, nan, %v563
    %v565 = vand.u32 2147483647, %v139
    %vm566 = vcmp.le.f32.partialorder %v565, 0.7853982
    %vm567 = vcmp.lt.s32.totalorder %v139, 0
    %v568 = vand.u32 %v139, 2139095040
    %v569 = vshrl.u32 %v568, 23
    %v570 = vsub.s32 %v569, 127
    %v571 = vand.u32 2147483647, %v139
    %v572 = vand.u32 %v571, 8388607
    %v573 = vor.u32 %v572, 8388608
    %v574 = vsub.s32 0, %v573
    %v575 = vadd.s32 %v570, 1
    %vm576 = vcmp.gt.s32.totalorder %v575, 0
    %v577 = vsel %vm576, %v575, 0
    %v578 = vshrl.u32 %v577, 5
    %v579 = vand.u32 %v577, 31
    %v580 = vsub.s32 32, %v579
    %v581 = vshrl.u32 683565275, %v580
    %v582 = vshll.u32 683565275, %v579
    %v583 = vshrl.u32 2475754826, %v580
    %v584 = vor.u32 %v582, %v583
    %v585 = vshll.u32 2475754826, %v579
    %v586 = vshrl.u32 2131351028, %v580
    %v587 = vor.u32 %v585, %v586
    %v588 = vshll.u32 2131351028, %v579
    %v589 = vshrl.u32 2102212464, %v580
    %v590 = vor.u32 %v588, %v589
    %v591 = vshll.u32 2102212464, %v579
    %v592 = vshrl.u32 920167782, %v580
    %v593 = vor.u32 %v591, %v592
    %v594 = vshll.u32 920167782, %v579
    %v595 = vshrl.u32 1326507024, %v580
    %v596 = vor.u32 %v594, %v595
    %vm597 = vcmp.lt.s32.totalorder %v578, 1
    %vm598 = vcmp.lt.s32.totalorder %v578, 2
    %vm599 = vcmp.lt.s32.totalorder %v578, 3
    %vm600 = vcmp.lt.s32.totalorder %v578, 4
    %v601 = vsel %vm597, %v581, %v584
    %v602 = vsel %vm600, %v590, 2102212464
    %v603 = vsel %vm599, %v587, %v602
    %v604 = vsel %vm598, %v601, %v603
    %v605 = vsel %vm597, %v584, %v587
    %v606 = vsel %vm600, %v593, 920167782
    %v607 = vsel %vm599, %v590, %v606
    %v608 = vsel %vm598, %v605, %v607
    %v609 = vsel %vm597, %v587, %v590
    %v610 = vsel %vm600, %v596, 1326507024
    %v611 = vsel %vm599, %v593, %v610
    %v612 = vsel %vm598, %v609, %v611
    %v613 = vshll.u32 %v573, 8
    %v614 = vmul.u32.u64.compose %v613, %v612
    %v615 = vextract.low.u32 %v614
    %v616 = vextract.high.u32 %v614
    %v617 = vmul.u32.u64.compose %v613, %v608
    %v618 = vextract.low.u32 %v617
    %v619 = vextract.high.u32 %v617
    %v620 = vmul.u32 %v613, %v604
    %v621 = vadd.s32 %v616, %v618
    %vm622 = vc.u32 %v616, %v618
    %v623 = vadd.s32 %v619, 1
    %v624 = vsel %vm622, %v623, %v619
    %v625 = vadd.s32 %v620, %v624
    %v626 = vadd.s32 %v625, 536870912
    %v627 = vshrl.u32 %v626, 30
    %v628 = vshll.u32 %v627, 30
    %v629 = vsub.s32 %v625, %v628
    %vm630 = vcmp.lt.s32.totalorder %v629, 0
    %v631 = vsub.s32 0, %v629
    %v632 = vsel %vm630, %v631, %v629
    %v633 = vclz %v632
    %v634 = vsub.s32 %v633, 2
    %vm635 = vcmp.gt.s32.totalorder 0, %v634
    %v636 = vsel %vm635, 0, %v634
    %v637 = vsub.s32 32, %v636
    %v638 = vshll.u32 %v629, %v636
    %v639 = vshrl.u32 %v621, %v637
    %v640 = vor.u32 %v638, %v639
    %v641 = vsub.s32 4294967266, %v636
    %v642 = vadd.s32 %v641, 127
    %v643 = vshll.u32 %v642, 23
    %v644 = vor.u32 4788187, %v643
    %v645 = vand.u32 2147483647, %v644
    %v647 = vcvt.s32.f32 %v640
    %v648 = vmul.f32 %v647, %v645
    %v649 = vxor.u32 %v648, 2147483648
    %v650 = vsel %vm567, %v649, %v648
    %v651 = vsub.s32 4, %v627
    %v652 = vsel %vm567, %v651, %v627
    %v653 = vsel %vm566, %v139, %v650
    %v654 = vsel %vm566, 0, %v652
    %v655 = vcosq.f32.pop %v653
    %v656 = vsinq.f32.pop %v653
    %vm657 = vweird.f32 %v139
    %v658 = vadd.s32 %v654, 3
    %v659 = vand.u32 %v658, 3
    %vm660 = vcmp.lt.s32.totalorder %v659, 2
    %vm661 = vcmp.eq.s32.totalorder %v659, 0
    %v662 = vxor.u32 %v656, 2147483648
    %v663 = vsel %vm661, %v655, %v662
    %vm664 = vcmp.eq.s32.totalorder %v659, 2
    %v665 = vxor.u32 %v655, 2147483648
    %v666 = vsel %vm664, %v665, %v656
    %v667 = vsel %vm660, %v663, %v666
    %v668 = vsel %vm657, nan, %v667
    %v669 = vand.u32 2147483647, %v141
    %vm670 = vcmp.le.f32.partialorder %v669, 0.7853982
    %vm671 = vcmp.lt.s32.totalorder %v141, 0
    %v672 = vand.u32 %v141, 2139095040
    %v673 = vshrl.u32 %v672, 23
    %v674 = vsub.s32 %v673, 127
    %v675 = vand.u32 2147483647, %v141
    %v676 = vand.u32 %v675, 8388607
    %v677 = vor.u32 %v676, 8388608
    %v678 = vsub.s32 0, %v677
    %v679 = vadd.s32 %v674, 1
    %vm680 = vcmp.gt.s32.totalorder %v679, 0
    %v681 = vsel %vm680, %v679, 0
    %v682 = vshrl.u32 %v681, 5
    %v683 = vand.u32 %v681, 31
    %v684 = vsub.s32 32, %v683
    %v685 = vshrl.u32 683565275, %v684
    %v686 = vshll.u32 683565275, %v683
    %v687 = vshrl.u32 2475754826, %v684
    %v688 = vor.u32 %v686, %v687
    %v689 = vshll.u32 2475754826, %v683
    %v690 = vshrl.u32 2131351028, %v684
    %v691 = vor.u32 %v689, %v690
    %v692 = vshll.u32 2131351028, %v683
    %v693 = vshrl.u32 2102212464, %v684
    %v694 = vor.u32 %v692, %v693
    %v695 = vshll.u32 2102212464, %v683
    %v696 = vshrl.u32 920167782, %v684
    %v697 = vor.u32 %v695, %v696
    %v698 = vshll.u32 920167782, %v683
    %v699 = vshrl.u32 1326507024, %v684
    %v700 = vor.u32 %v698, %v699
    %vm701 = vcmp.lt.s32.totalorder %v682, 1
    %vm702 = vcmp.lt.s32.totalorder %v682, 2
    %vm703 = vcmp.lt.s32.totalorder %v682, 3
    %vm704 = vcmp.lt.s32.totalorder %v682, 4
    %v705 = vsel %vm701, %v685, %v688
    %v706 = vsel %vm704, %v694, 2102212464
    %v707 = vsel %vm703, %v691, %v706
    %v708 = vsel %vm702, %v705, %v707
    %v709 = vsel %vm701, %v688, %v691
    %v710 = vsel %vm704, %v697, 920167782
    %v711 = vsel %vm703, %v694, %v710
    %v712 = vsel %vm702, %v709, %v711
    %v713 = vsel %vm701, %v691, %v694
    %v714 = vsel %vm704, %v700, 1326507024
    %v715 = vsel %vm703, %v697, %v714
    %v716 = vsel %vm702, %v713, %v715
    %v717 = vshll.u32 %v677, 8
    %v718 = vmul.u32.u64.compose %v717, %v716
    %v719 = vextract.low.u32 %v718
    %v720 = vextract.high.u32 %v718
    %v721 = vmul.u32.u64.compose %v717, %v712
    %v722 = vextract.low.u32 %v721
    %v723 = vextract.high.u32 %v721
    %v724 = vmul.u32 %v717, %v708
    %v725 = vadd.s32 %v720, %v722
    %vm726 = vc.u32 %v720, %v722
    %v727 = vadd.s32 %v723, 1
    %v728 = vsel %vm726, %v727, %v723
    %v729 = vadd.s32 %v724, %v728
    %v730 = vadd.s32 %v729, 536870912
    %v731 = vshrl.u32 %v730, 30
    %v732 = vshll.u32 %v731, 30
    %v733 = vsub.s32 %v729, %v732
    %vm734 = vcmp.lt.s32.totalorder %v733, 0
    %v735 = vsub.s32 0, %v733
    %v736 = vsel %vm734, %v735, %v733
    %v737 = vclz %v736
    %v738 = vsub.s32 %v737, 2
    %vm739 = vcmp.gt.s32.totalorder 0, %v738
    %v740 = vsel %vm739, 0, %v738
    %v741 = vsub.s32 32, %v740
    %v742 = vshll.u32 %v733, %v740
    %v743 = vshrl.u32 %v725, %v741
    %v744 = vor.u32 %v742, %v743
    %v745 = vsub.s32 4294967266, %v740
    %v746 = vadd.s32 %v745, 127
    %v747 = vshll.u32 %v746, 23
    %v748 = vor.u32 4788187, %v747
    %v749 = vand.u32 2147483647, %v748
    %v751 = vcvt.s32.f32 %v744
    %v752 = vmul.f32 %v751, %v749
    %v753 = vxor.u32 %v752, 2147483648
    %v754 = vsel %vm671, %v753, %v752
    %v755 = vsub.s32 4, %v731
    %v756 = vsel %vm671, %v755, %v731
    %v757 = vsel %vm670, %v141, %v754
    %v758 = vsel %vm670, 0, %v756
    %v759 = vcosq.f32.pop %v757
    %v760 = vsinq.f32.pop %v757
    %vm761 = vweird.f32 %v141
    %v762 = vadd.s32 %v758, 3
    %v763 = vand.u32 %v762, 3
    %vm764 = vcmp.lt.s32.totalorder %v763, 2
    %vm765 = vcmp.eq.s32.totalorder %v763, 0
    %v766 = vxor.u32 %v760, 2147483648
    %v767 = vsel %vm765, %v759, %v766
    %vm768 = vcmp.eq.s32.totalorder %v763, 2
    %v769 = vxor.u32 %v759, 2147483648
    %v770 = vsel %vm768, %v769, %v760
    %v771 = vsel %vm764, %v767, %v770
    %v772 = vsel %vm761, nan, %v771
    %v773 = vand.u32 2147483647, %v145
    %vm774 = vcmp.le.f32.partialorder %v773, 0.7853982
    %vm775 = vcmp.lt.s32.totalorder %v145, 0
    %v776 = vand.u32 %v145, 2139095040
    %v777 = vshrl.u32 %v776, 23
    %v778 = vsub.s32 %v777, 127
    %v779 = vand.u32 2147483647, %v145
    %v780 = vand.u32 %v779, 8388607
    %v781 = vor.u32 %v780, 8388608
    %v782 = vsub.s32 0, %v781
    %v783 = vadd.s32 %v778, 1
    %vm784 = vcmp.gt.s32.totalorder %v783, 0
    %v785 = vsel %vm784, %v783, 0
    %v786 = vshrl.u32 %v785, 5
    %v787 = vand.u32 %v785, 31
    %v788 = vsub.s32 32, %v787
    %v789 = vshrl.u32 683565275, %v788
    %v790 = vshll.u32 683565275, %v787
    %v791 = vshrl.u32 2475754826, %v788
    %v792 = vor.u32 %v790, %v791
    %v793 = vshll.u32 2475754826, %v787
    %v794 = vshrl.u32 2131351028, %v788
    %v795 = vor.u32 %v793, %v794
    %v796 = vshll.u32 2131351028, %v787
    %v797 = vshrl.u32 2102212464, %v788
    %v798 = vor.u32 %v796, %v797
    %v799 = vshll.u32 2102212464, %v787
    %v800 = vshrl.u32 920167782, %v788
    %v801 = vor.u32 %v799, %v800
    %v802 = vshll.u32 920167782, %v787
    %v803 = vshrl.u32 1326507024, %v788
    %v804 = vor.u32 %v802, %v803
    %vm805 = vcmp.lt.s32.totalorder %v786, 1
    %vm806 = vcmp.lt.s32.totalorder %v786, 2
    %vm807 = vcmp.lt.s32.totalorder %v786, 3
    %vm808 = vcmp.lt.s32.totalorder %v786, 4
    %v809 = vsel %vm805, %v789, %v792
    %v810 = vsel %vm808, %v798, 2102212464
    %v811 = vsel %vm807, %v795, %v810
    %v812 = vsel %vm806, %v809, %v811
    %v813 = vsel %vm805, %v792, %v795
    %v814 = vsel %vm808, %v801, 920167782
    %v815 = vsel %vm807, %v798, %v814
    %v816 = vsel %vm806, %v813, %v815
    %v817 = vsel %vm805, %v795, %v798
    %v818 = vsel %vm808, %v804, 1326507024
    %v819 = vsel %vm807, %v801, %v818
    %v820 = vsel %vm806, %v817, %v819
    %v821 = vshll.u32 %v781, 8
    %v822 = vmul.u32.u64.compose %v821, %v820
    %v823 = vextract.low.u32 %v822
    %v824 = vextract.high.u32 %v822
    %v825 = vmul.u32.u64.compose %v821, %v816
    %v826 = vextract.low.u32 %v825
    %v827 = vextract.high.u32 %v825
    %v828 = vmul.u32 %v821, %v812
    %v829 = vadd.s32 %v824, %v826
    %vm830 = vc.u32 %v824, %v826
    %v831 = vadd.s32 %v827, 1
    %v832 = vsel %vm830, %v831, %v827
    %v833 = vadd.s32 %v828, %v832
    %v834 = vadd.s32 %v833, 536870912
    %v835 = vshrl.u32 %v834, 30
    %v836 = vshll.u32 %v835, 30
    %v837 = vsub.s32 %v833, %v836
    %vm838 = vcmp.lt.s32.totalorder %v837, 0
    %v839 = vsub.s32 0, %v837
    %v840 = vsel %vm838, %v839, %v837
    %v841 = vclz %v840
    %v842 = vsub.s32 %v841, 2
    %vm843 = vcmp.gt.s32.totalorder 0, %v842
    %v844 = vsel %vm843, 0, %v842
    %v845 = vsub.s32 32, %v844
    %v846 = vshll.u32 %v837, %v844
    %v847 = vshrl.u32 %v829, %v845
    %v848 = vor.u32 %v846, %v847
    %v849 = vsub.s32 4294967266, %v844
    %v850 = vadd.s32 %v849, 127
    %v851 = vshll.u32 %v850, 23
    %v852 = vor.u32 4788187, %v851
    %v853 = vand.u32 2147483647, %v852
    %v855 = vcvt.s32.f32 %v848
    %v856 = vmul.f32 %v855, %v853
    %v857 = vxor.u32 %v856, 2147483648
    %v858 = vsel %vm775, %v857, %v856
    %v859 = vsub.s32 4, %v835
    %v860 = vsel %vm775, %v859, %v835
    %v861 = vsel %vm774, %v145, %v858
    %v862 = vsel %vm774, 0, %v860
    %v863 = vcosq.f32.pop %v861
    %v864 = vsinq.f32.pop %v861
    %vm865 = vweird.f32 %v145
    %v866 = vadd.s32 %v862, 3
    %v867 = vand.u32 %v866, 3
    %vm868 = vcmp.lt.s32.totalorder %v867, 2
    %vm869 = vcmp.eq.s32.totalorder %v867, 0
    %v870 = vxor.u32 %v864, 2147483648
    %v871 = vsel %vm869, %v863, %v870
    %vm872 = vcmp.eq.s32.totalorder %v867, 2
    %v873 = vxor.u32 %v863, 2147483648
    %v874 = vsel %vm872, %v873, %v864
    %v875 = vsel %vm868, %v871, %v874
    %v876 = vsel %vm865, nan, %v875
    %v877 = vand.u32 2147483647, %v147
    %vm878 = vcmp.le.f32.partialorder %v877, 0.7853982
    %vm879 = vcmp.lt.s32.totalorder %v147, 0
    %v880 = vand.u32 %v147, 2139095040
    %v881 = vshrl.u32 %v880, 23
    %v882 = vsub.s32 %v881, 127
    %v883 = vand.u32 2147483647, %v147
    %v884 = vand.u32 %v883, 8388607
    %v885 = vor.u32 %v884, 8388608
    %v886 = vsub.s32 0, %v885
    %v887 = vadd.s32 %v882, 1
    %vm888 = vcmp.gt.s32.totalorder %v887, 0
    %v889 = vsel %vm888, %v887, 0
    %v890 = vshrl.u32 %v889, 5
    %v891 = vand.u32 %v889, 31
    %v892 = vsub.s32 32, %v891
    %v893 = vshrl.u32 683565275, %v892
    %v894 = vshll.u32 683565275, %v891
    %v895 = vshrl.u32 2475754826, %v892
    %v896 = vor.u32 %v894, %v895
    %v897 = vshll.u32 2475754826, %v891
    %v898 = vshrl.u32 2131351028, %v892
    %v899 = vor.u32 %v897, %v898
    %v900 = vshll.u32 2131351028, %v891
    %v901 = vshrl.u32 2102212464, %v892
    %v902 = vor.u32 %v900, %v901
    %v903 = vshll.u32 2102212464, %v891
    %v904 = vshrl.u32 920167782, %v892
    %v905 = vor.u32 %v903, %v904
    %v906 = vshll.u32 920167782, %v891
    %v907 = vshrl.u32 1326507024, %v892
    %v908 = vor.u32 %v906, %v907
    %vm909 = vcmp.lt.s32.totalorder %v890, 1
    %vm910 = vcmp.lt.s32.totalorder %v890, 2
    %vm911 = vcmp.lt.s32.totalorder %v890, 3
    %vm912 = vcmp.lt.s32.totalorder %v890, 4
    %v913 = vsel %vm909, %v893, %v896
    %v914 = vsel %vm912, %v902, 2102212464
    %v915 = vsel %vm911, %v899, %v914
    %v916 = vsel %vm910, %v913, %v915
    %v917 = vsel %vm909, %v896, %v899
    %v918 = vsel %vm912, %v905, 920167782
    %v919 = vsel %vm911, %v902, %v918
    %v920 = vsel %vm910, %v917, %v919
    %v921 = vsel %vm909, %v899, %v902
    %v922 = vsel %vm912, %v908, 1326507024
    %v923 = vsel %vm911, %v905, %v922
    %v924 = vsel %vm910, %v921, %v923
    %v925 = vshll.u32 %v885, 8
    %v926 = vmul.u32.u64.compose %v925, %v924
    %v927 = vextract.low.u32 %v926
    %v928 = vextract.high.u32 %v926
    %v929 = vmul.u32.u64.compose %v925, %v920
    %v930 = vextract.low.u32 %v929
    %v931 = vextract.high.u32 %v929
    %v932 = vmul.u32 %v925, %v916
    %v933 = vadd.s32 %v928, %v930
    %vm934 = vc.u32 %v928, %v930
    %v935 = vadd.s32 %v931, 1
    %v936 = vsel %vm934, %v935, %v931
    %v937 = vadd.s32 %v932, %v936
    %v938 = vadd.s32 %v937, 536870912
    %v939 = vshrl.u32 %v938, 30
    %v940 = vshll.u32 %v939, 30
    %v941 = vsub.s32 %v937, %v940
    %vm942 = vcmp.lt.s32.totalorder %v941, 0
    %v943 = vsub.s32 0, %v941
    %v944 = vsel %vm942, %v943, %v941
    %v945 = vclz %v944
    %v946 = vsub.s32 %v945, 2
    %vm947 = vcmp.gt.s32.totalorder 0, %v946
    %v948 = vsel %vm947, 0, %v946
    %v949 = vsub.s32 32, %v948
    %v950 = vshll.u32 %v941, %v948
    %v951 = vshrl.u32 %v933, %v949
    %v952 = vor.u32 %v950, %v951
    %v953 = vsub.s32 4294967266, %v948
    %v954 = vadd.s32 %v953, 127
    %v955 = vshll.u32 %v954, 23
    %v956 = vor.u32 4788187, %v955
    %v957 = vand.u32 2147483647, %v956
    %v959 = vcvt.s32.f32 %v952
    %v960 = vmul.f32 %v959, %v957
    %v961 = vxor.u32 %v960, 2147483648
    %v962 = vsel %vm879, %v961, %v960
    %v963 = vsub.s32 4, %v939
    %v964 = vsel %vm879, %v963, %v939
    %v965 = vsel %vm878, %v147, %v962
    %v966 = vsel %vm878, 0, %v964
    %v967 = vcosq.f32.pop %v965
    %v968 = vsinq.f32.pop %v965
    %vm969 = vweird.f32 %v147
    %v970 = vadd.s32 %v966, 3
    %v971 = vand.u32 %v970, 3
    %vm972 = vcmp.lt.s32.totalorder %v971, 2
    %vm973 = vcmp.eq.s32.totalorder %v971, 0
    %v974 = vxor.u32 %v968, 2147483648
    %v975 = vsel %vm973, %v967, %v974
    %vm976 = vcmp.eq.s32.totalorder %v971, 2
    %v977 = vxor.u32 %v967, 2147483648
    %v978 = vsel %vm976, %v977, %v968
    %v979 = vsel %vm972, %v975, %v978
    %v980 = vsel %vm969, nan, %v979
    %981 = vst [vmem:[#allocation2] sm:$0xff] %v252
    %982 = vst [vmem:[#allocation2 + $0x8] sm:$0xff] %v356
    %983 = vst [vmem:[#allocation2 + $0x10] sm:$0xff] %v460
    %984 = vst [vmem:[#allocation2 + $0x18] sm:$0xff] %v564
    %985 = vst [vmem:[#allocation2 + $0x20] sm:$0xff] %v668
    %986 = vst [vmem:[#allocation2 + $0x28] sm:$0xff] %v772
    %987 = vst [vmem:[#allocation2 + $0x30] sm:$0xff] %v876
    %988 = vst [vmem:[#allocation2 + $0x38] sm:$0xff] %v980
    %v989 = vand.u32 2147483647, %v127
    %vm990 = vcmp.le.f32.partialorder %v989, 0.7853982
    %vm991 = vcmp.lt.s32.totalorder %v127, 0
    %v992 = vand.u32 %v127, 2139095040
    %v993 = vshrl.u32 %v992, 23
    %v994 = vsub.s32 %v993, 127
    %v995 = vand.u32 2147483647, %v127
    %v996 = vand.u32 %v995, 8388607
    %v997 = vor.u32 %v996, 8388608
    %v998 = vsub.s32 0, %v997
    %v999 = vadd.s32 %v994, 1
    %vm1000 = vcmp.gt.s32.totalorder %v999, 0
    %v1001 = vsel %vm1000, %v999, 0
    %v1002 = vshrl.u32 %v1001, 5
    %v1003 = vand.u32 %v1001, 31
    %v1004 = vsub.s32 32, %v1003
    %v1005 = vshrl.u32 683565275, %v1004
    %v1006 = vshll.u32 683565275, %v1003
    %v1007 = vshrl.u32 2475754826, %v1004
    %v1008 = vor.u32 %v1006, %v1007
    %v1009 = vshll.u32 2475754826, %v1003
    %v1010 = vshrl.u32 2131351028, %v1004
    %v1011 = vor.u32 %v1009, %v1010
    %v1012 = vshll.u32 2131351028, %v1003
    %v1013 = vshrl.u32 2102212464, %v1004
    %v1014 = vor.u32 %v1012, %v1013
    %v1015 = vshll.u32 2102212464, %v1003
    %v1016 = vshrl.u32 920167782, %v1004
    %v1017 = vor.u32 %v1015, %v1016
    %v1018 = vshll.u32 920167782, %v1003
    %v1019 = vshrl.u32 1326507024, %v1004
    %v1020 = vor.u32 %v1018, %v1019
    %vm1021 = vcmp.lt.s32.totalorder %v1002, 1
    %vm1022 = vcmp.lt.s32.totalorder %v1002, 2
    %vm1023 = vcmp.lt.s32.totalorder %v1002, 3
    %vm1024 = vcmp.lt.s32.totalorder %v1002, 4
    %v1025 = vsel %vm1021, %v1005, %v1008
    %v1026 = vsel %vm1024, %v1014, 2102212464
    %v1027 = vsel %vm1023, %v1011, %v1026
    %v1028 = vsel %vm1022, %v1025, %v1027
    %v1029 = vsel %vm1021, %v1008, %v1011
    %v1030 = vsel %vm1024, %v1017, 920167782
    %v1031 = vsel %vm1023, %v1014, %v1030
    %v1032 = vsel %vm1022, %v1029, %v1031
    %v1033 = vsel %vm1021, %v1011, %v1014
    %v1034 = vsel %vm1024, %v1020, 1326507024
    %v1035 = vsel %vm1023, %v1017, %v1034
    %v1036 = vsel %vm1022, %v1033, %v1035
    %v1037 = vshll.u32 %v997, 8
    %v1038 = vmul.u32.u64.compose %v1037, %v1036
    %v1039 = vextract.low.u32 %v1038
    %v1040 = vextract.high.u32 %v1038
    %v1041 = vmul.u32.u64.compose %v1037, %v1032
    %v1042 = vextract.low.u32 %v1041
    %v1043 = vextract.high.u32 %v1041
    %v1044 = vmul.u32 %v1037, %v1028
    %v1045 = vadd.s32 %v1040, %v1042
    %vm1046 = vc.u32 %v1040, %v1042
    %v1047 = vadd.s32 %v1043, 1
    %v1048 = vsel %vm1046, %v1047, %v1043
    %v1049 = vadd.s32 %v1044, %v1048
    %v1050 = vadd.s32 %v1049, 536870912
    %v1051 = vshrl.u32 %v1050, 30
    %v1052 = vshll.u32 %v1051, 30
    %v1053 = vsub.s32 %v1049, %v1052
    %vm1054 = vcmp.lt.s32.totalorder %v1053, 0
    %v1055 = vsub.s32 0, %v1053
    %v1056 = vsel %vm1054, %v1055, %v1053
    %v1057 = vclz %v1056
    %v1058 = vsub.s32 %v1057, 2
    %vm1059 = vcmp.gt.s32.totalorder 0, %v1058
    %v1060 = vsel %vm1059, 0, %v1058
    %v1061 = vsub.s32 32, %v1060
    %v1062 = vshll.u32 %v1053, %v1060
    %v1063 = vshrl.u32 %v1045, %v1061
    %v1064 = vor.u32 %v1062, %v1063
    %v1065 = vsub.s32 4294967266, %v1060
    %v1066 = vadd.s32 %v1065, 127
    %v1067 = vshll.u32 %v1066, 23
    %v1068 = vor.u32 4788187, %v1067
    %v1069 = vand.u32 2147483647, %v1068
    %v1071 = vcvt.s32.f32 %v1064
    %v1072 = vmul.f32 %v1071, %v1069
    %v1073 = vxor.u32 %v1072, 2147483648
    %v1074 = vsel %vm991, %v1073, %v1072
    %v1075 = vsub.s32 4, %v1051
    %v1076 = vsel %vm991, %v1075, %v1051
    %v1077 = vsel %vm990, %v127, %v1074
    %v1078 = vsel %vm990, 0, %v1076
    %v1079 = vcosq.f32.pop %v1077
    %v1080 = vsinq.f32.pop %v1077
    %vm1081 = vweird.f32 %v127
    %v1082 = vand.u32 %v1078, 3
    %vm1083 = vcmp.lt.s32.totalorder %v1082, 2
    %vm1084 = vcmp.eq.s32.totalorder %v1082, 0
    %v1085 = vxor.u32 %v1080, 2147483648
    %v1086 = vsel %vm1084, %v1079, %v1085
    %vm1087 = vcmp.eq.s32.totalorder %v1082, 2
    %v1088 = vxor.u32 %v1079, 2147483648
    %v1089 = vsel %vm1087, %v1088, %v1080
    %v1090 = vsel %vm1083, %v1086, %v1089
    %v1091 = vsel %vm1081, nan, %v1090
    %v1092 = vand.u32 2147483647, %v129
    %vm1093 = vcmp.le.f32.partialorder %v1092, 0.7853982
    %vm1094 = vcmp.lt.s32.totalorder %v129, 0
    %v1095 = vand.u32 %v129, 2139095040
    %v1096 = vshrl.u32 %v1095, 23
    %v1097 = vsub.s32 %v1096, 127
    %v1098 = vand.u32 2147483647, %v129
    %v1099 = vand.u32 %v1098, 8388607
    %v1100 = vor.u32 %v1099, 8388608
    %v1101 = vsub.s32 0, %v1100
    %v1102 = vadd.s32 %v1097, 1
    %vm1103 = vcmp.gt.s32.totalorder %v1102, 0
    %v1104 = vsel %vm1103, %v1102, 0
    %v1105 = vshrl.u32 %v1104, 5
    %v1106 = vand.u32 %v1104, 31
    %v1107 = vsub.s32 32, %v1106
    %v1108 = vshrl.u32 683565275, %v1107
    %v1109 = vshll.u32 683565275, %v1106
    %v1110 = vshrl.u32 2475754826, %v1107
    %v1111 = vor.u32 %v1109, %v1110
    %v1112 = vshll.u32 2475754826, %v1106
    %v1113 = vshrl.u32 2131351028, %v1107
    %v1114 = vor.u32 %v1112, %v1113
    %v1115 = vshll.u32 2131351028, %v1106
    %v1116 = vshrl.u32 2102212464, %v1107
    %v1117 = vor.u32 %v1115, %v1116
    %v1118 = vshll.u32 2102212464, %v1106
    %v1119 = vshrl.u32 920167782, %v1107
    %v1120 = vor.u32 %v1118, %v1119
    %v1121 = vshll.u32 920167782, %v1106
    %v1122 = vshrl.u32 1326507024, %v1107
    %v1123 = vor.u32 %v1121, %v1122
    %vm1124 = vcmp.lt.s32.totalorder %v1105, 1
    %vm1125 = vcmp.lt.s32.totalorder %v1105, 2
    %vm1126 = vcmp.lt.s32.totalorder %v1105, 3
    %vm1127 = vcmp.lt.s32.totalorder %v1105, 4
    %v1128 = vsel %vm1124, %v1108, %v1111
    %v1129 = vsel %vm1127, %v1117, 2102212464
    %v1130 = vsel %vm1126, %v1114, %v1129
    %v1131 = vsel %vm1125, %v1128, %v1130
    %v1132 = vsel %vm1124, %v1111, %v1114
    %v1133 = vsel %vm1127, %v1120, 920167782
    %v1134 = vsel %vm1126, %v1117, %v1133
    %v1135 = vsel %vm1125, %v1132, %v1134
    %v1136 = vsel %vm1124, %v1114, %v1117
    %v1137 = vsel %vm1127, %v1123, 1326507024
    %v1138 = vsel %vm1126, %v1120, %v1137
    %v1139 = vsel %vm1125, %v1136, %v1138
    %v1140 = vshll.u32 %v1100, 8
    %v1141 = vmul.u32.u64.compose %v1140, %v1139
    %v1142 = vextract.low.u32 %v1141
    %v1143 = vextract.high.u32 %v1141
    %v1144 = vmul.u32.u64.compose %v1140, %v1135
    %v1145 = vextract.low.u32 %v1144
    %v1146 = vextract.high.u32 %v1144
    %v1147 = vmul.u32 %v1140, %v1131
    %v1148 = vadd.s32 %v1143, %v1145
    %vm1149 = vc.u32 %v1143, %v1145
    %v1150 = vadd.s32 %v1146, 1
    %v1151 = vsel %vm1149, %v1150, %v1146
    %v1152 = vadd.s32 %v1147, %v1151
    %v1153 = vadd.s32 %v1152, 536870912
    %v1154 = vshrl.u32 %v1153, 30
    %v1155 = vshll.u32 %v1154, 30
    %v1156 = vsub.s32 %v1152, %v1155
    %vm1157 = vcmp.lt.s32.totalorder %v1156, 0
    %v1158 = vsub.s32 0, %v1156
    %v1159 = vsel %vm1157, %v1158, %v1156
    %v1160 = vclz %v1159
    %v1161 = vsub.s32 %v1160, 2
    %vm1162 = vcmp.gt.s32.totalorder 0, %v1161
    %v1163 = vsel %vm1162, 0, %v1161
    %v1164 = vsub.s32 32, %v1163
    %v1165 = vshll.u32 %v1156, %v1163
    %v1166 = vshrl.u32 %v1148, %v1164
    %v1167 = vor.u32 %v1165, %v1166
    %v1168 = vsub.s32 4294967266, %v1163
    %v1169 = vadd.s32 %v1168, 127
    %v1170 = vshll.u32 %v1169, 23
    %v1171 = vor.u32 4788187, %v1170
    %v1172 = vand.u32 2147483647, %v1171
    %v1174 = vcvt.s32.f32 %v1167
    %v1175 = vmul.f32 %v1174, %v1172
    %v1176 = vxor.u32 %v1175, 2147483648
    %v1177 = vsel %vm1094, %v1176, %v1175
    %v1178 = vsub.s32 4, %v1154
    %v1179 = vsel %vm1094, %v1178, %v1154
    %v1180 = vsel %vm1093, %v129, %v1177
    %v1181 = vsel %vm1093, 0, %v1179
    %v1182 = vcosq.f32.pop %v1180
    %v1183 = vsinq.f32.pop %v1180
    %vm1184 = vweird.f32 %v129
    %v1185 = vand.u32 %v1181, 3
    %vm1186 = vcmp.lt.s32.totalorder %v1185, 2
    %vm1187 = vcmp.eq.s32.totalorder %v1185, 0
    %v1188 = vxor.u32 %v1183, 2147483648
    %v1189 = vsel %vm1187, %v1182, %v1188
    %vm1190 = vcmp.eq.s32.totalorder %v1185, 2
    %v1191 = vxor.u32 %v1182, 2147483648
    %v1192 = vsel %vm1190, %v1191, %v1183
    %v1193 = vsel %vm1186, %v1189, %v1192
    %v1194 = vsel %vm1184, nan, %v1193
    %v1195 = vand.u32 2147483647, %v133
    %vm1196 = vcmp.le.f32.partialorder %v1195, 0.7853982
    %vm1197 = vcmp.lt.s32.totalorder %v133, 0
    %v1198 = vand.u32 %v133, 2139095040
    %v1199 = vshrl.u32 %v1198, 23
    %v1200 = vsub.s32 %v1199, 127
    %v1201 = vand.u32 2147483647, %v133
    %v1202 = vand.u32 %v1201, 8388607
    %v1203 = vor.u32 %v1202, 8388608
    %v1204 = vsub.s32 0, %v1203
    %v1205 = vadd.s32 %v1200, 1
    %vm1206 = vcmp.gt.s32.totalorder %v1205, 0
    %v1207 = vsel %vm1206, %v1205, 0
    %v1208 = vshrl.u32 %v1207, 5
    %v1209 = vand.u32 %v1207, 31
    %v1210 = vsub.s32 32, %v1209
    %v1211 = vshrl.u32 683565275, %v1210
    %v1212 = vshll.u32 683565275, %v1209
    %v1213 = vshrl.u32 2475754826, %v1210
    %v1214 = vor.u32 %v1212, %v1213
    %v1215 = vshll.u32 2475754826, %v1209
    %v1216 = vshrl.u32 2131351028, %v1210
    %v1217 = vor.u32 %v1215, %v1216
    %v1218 = vshll.u32 2131351028, %v1209
    %v1219 = vshrl.u32 2102212464, %v1210
    %v1220 = vor.u32 %v1218, %v1219
    %v1221 = vshll.u32 2102212464, %v1209
    %v1222 = vshrl.u32 920167782, %v1210
    %v1223 = vor.u32 %v1221, %v1222
    %v1224 = vshll.u32 920167782, %v1209
    %v1225 = vshrl.u32 1326507024, %v1210
    %v1226 = vor.u32 %v1224, %v1225
    %vm1227 = vcmp.lt.s32.totalorder %v1208, 1
    %vm1228 = vcmp.lt.s32.totalorder %v1208, 2
    %vm1229 = vcmp.lt.s32.totalorder %v1208, 3
    %vm1230 = vcmp.lt.s32.totalorder %v1208, 4
    %v1231 = vsel %vm1227, %v1211, %v1214
    %v1232 = vsel %vm1230, %v1220, 2102212464
    %v1233 = vsel %vm1229, %v1217, %v1232
    %v1234 = vsel %vm1228, %v1231, %v1233
    %v1235 = vsel %vm1227, %v1214, %v1217
    %v1236 = vsel %vm1230, %v1223, 920167782
    %v1237 = vsel %vm1229, %v1220, %v1236
    %v1238 = vsel %vm1228, %v1235, %v1237
    %v1239 = vsel %vm1227, %v1217, %v1220
    %v1240 = vsel %vm1230, %v1226, 1326507024
    %v1241 = vsel %vm1229, %v1223, %v1240
    %v1242 = vsel %vm1228, %v1239, %v1241
    %v1243 = vshll.u32 %v1203, 8
    %v1244 = vmul.u32.u64.compose %v1243, %v1242
    %v1245 = vextract.low.u32 %v1244
    %v1246 = vextract.high.u32 %v1244
    %v1247 = vmul.u32.u64.compose %v1243, %v1238
    %v1248 = vextract.low.u32 %v1247
    %v1249 = vextract.high.u32 %v1247
    %v1250 = vmul.u32 %v1243, %v1234
    %v1251 = vadd.s32 %v1246, %v1248
    %vm1252 = vc.u32 %v1246, %v1248
    %v1253 = vadd.s32 %v1249, 1
    %v1254 = vsel %vm1252, %v1253, %v1249
    %v1255 = vadd.s32 %v1250, %v1254
    %v1256 = vadd.s32 %v1255, 536870912
    %v1257 = vshrl.u32 %v1256, 30
    %v1258 = vshll.u32 %v1257, 30
    %v1259 = vsub.s32 %v1255, %v1258
    %vm1260 = vcmp.lt.s32.totalorder %v1259, 0
    %v1261 = vsub.s32 0, %v1259
    %v1262 = vsel %vm1260, %v1261, %v1259
    %v1263 = vclz %v1262
    %v1264 = vsub.s32 %v1263, 2
    %vm1265 = vcmp.gt.s32.totalorder 0, %v1264
    %v1266 = vsel %vm1265, 0, %v1264
    %v1267 = vsub.s32 32, %v1266
    %v1268 = vshll.u32 %v1259, %v1266
    %v1269 = vshrl.u32 %v1251, %v1267
    %v1270 = vor.u32 %v1268, %v1269
    %v1271 = vsub.s32 4294967266, %v1266
    %v1272 = vadd.s32 %v1271, 127
    %v1273 = vshll.u32 %v1272, 23
    %v1274 = vor.u32 4788187, %v1273
    %v1275 = vand.u32 2147483647, %v1274
    %v1277 = vcvt.s32.f32 %v1270
    %v1278 = vmul.f32 %v1277, %v1275
    %v1279 = vxor.u32 %v1278, 2147483648
    %v1280 = vsel %vm1197, %v1279, %v1278
    %v1281 = vsub.s32 4, %v1257
    %v1282 = vsel %vm1197, %v1281, %v1257
    %v1283 = vsel %vm1196, %v133, %v1280
    %v1284 = vsel %vm1196, 0, %v1282
    %v1285 = vcosq.f32.pop %v1283
    %v1286 = vsinq.f32.pop %v1283
    %vm1287 = vweird.f32 %v133
    %v1288 = vand.u32 %v1284, 3
    %vm1289 = vcmp.lt.s32.totalorder %v1288, 2
    %vm1290 = vcmp.eq.s32.totalorder %v1288, 0
    %v1291 = vxor.u32 %v1286, 2147483648
    %v1292 = vsel %vm1290, %v1285, %v1291
    %vm1293 = vcmp.eq.s32.totalorder %v1288, 2
    %v1294 = vxor.u32 %v1285, 2147483648
    %v1295 = vsel %vm1293, %v1294, %v1286
    %v1296 = vsel %vm1289, %v1292, %v1295
    %v1297 = vsel %vm1287, nan, %v1296
    %v1298 = vand.u32 2147483647, %v135
    %vm1299 = vcmp.le.f32.partialorder %v1298, 0.7853982
    %vm1300 = vcmp.lt.s32.totalorder %v135, 0
    %v1301 = vand.u32 %v135, 2139095040
    %v1302 = vshrl.u32 %v1301, 23
    %v1303 = vsub.s32 %v1302, 127
    %v1304 = vand.u32 2147483647, %v135
    %v1305 = vand.u32 %v1304, 8388607
    %v1306 = vor.u32 %v1305, 8388608
    %v1307 = vsub.s32 0, %v1306
    %v1308 = vadd.s32 %v1303, 1
    %vm1309 = vcmp.gt.s32.totalorder %v1308, 0
    %v1310 = vsel %vm1309, %v1308, 0
    %v1311 = vshrl.u32 %v1310, 5
    %v1312 = vand.u32 %v1310, 31
    %v1313 = vsub.s32 32, %v1312
    %v1314 = vshrl.u32 683565275, %v1313
    %v1315 = vshll.u32 683565275, %v1312
    %v1316 = vshrl.u32 2475754826, %v1313
    %v1317 = vor.u32 %v1315, %v1316
    %v1318 = vshll.u32 2475754826, %v1312
    %v1319 = vshrl.u32 2131351028, %v1313
    %v1320 = vor.u32 %v1318, %v1319
    %v1321 = vshll.u32 2131351028, %v1312
    %v1322 = vshrl.u32 2102212464, %v1313
    %v1323 = vor.u32 %v1321, %v1322
    %v1324 = vshll.u32 2102212464, %v1312
    %v1325 = vshrl.u32 920167782, %v1313
    %v1326 = vor.u32 %v1324, %v1325
    %v1327 = vshll.u32 920167782, %v1312
    %v1328 = vshrl.u32 1326507024, %v1313
    %v1329 = vor.u32 %v1327, %v1328
    %vm1330 = vcmp.lt.s32.totalorder %v1311, 1
    %vm1331 = vcmp.lt.s32.totalorder %v1311, 2
    %vm1332 = vcmp.lt.s32.totalorder %v1311, 3
    %vm1333 = vcmp.lt.s32.totalorder %v1311, 4
    %v1334 = vsel %vm1330, %v1314, %v1317
    %v1335 = vsel %vm1333, %v1323, 2102212464
    %v1336 = vsel %vm1332, %v1320, %v1335
    %v1337 = vsel %vm1331, %v1334, %v1336
    %v1338 = vsel %vm1330, %v1317, %v1320
    %v1339 = vsel %vm1333, %v1326, 920167782
    %v1340 = vsel %vm1332, %v1323, %v1339
    %v1341 = vsel %vm1331, %v1338, %v1340
    %v1342 = vsel %vm1330, %v1320, %v1323
    %v1343 = vsel %vm1333, %v1329, 1326507024
    %v1344 = vsel %vm1332, %v1326, %v1343
    %v1345 = vsel %vm1331, %v1342, %v1344
    %v1346 = vshll.u32 %v1306, 8
    %v1347 = vmul.u32.u64.compose %v1346, %v1345
    %v1348 = vextract.low.u32 %v1347
    %v1349 = vextract.high.u32 %v1347
    %v1350 = vmul.u32.u64.compose %v1346, %v1341
    %v1351 = vextract.low.u32 %v1350
    %v1352 = vextract.high.u32 %v1350
    %v1353 = vmul.u32 %v1346, %v1337
    %v1354 = vadd.s32 %v1349, %v1351
    %vm1355 = vc.u32 %v1349, %v1351
    %v1356 = vadd.s32 %v1352, 1
    %v1357 = vsel %vm1355, %v1356, %v1352
    %v1358 = vadd.s32 %v1353, %v1357
    %v1359 = vadd.s32 %v1358, 536870912
    %v1360 = vshrl.u32 %v1359, 30
    %v1361 = vshll.u32 %v1360, 30
    %v1362 = vsub.s32 %v1358, %v1361
    %vm1363 = vcmp.lt.s32.totalorder %v1362, 0
    %v1364 = vsub.s32 0, %v1362
    %v1365 = vsel %vm1363, %v1364, %v1362
    %v1366 = vclz %v1365
    %v1367 = vsub.s32 %v1366, 2
    %vm1368 = vcmp.gt.s32.totalorder 0, %v1367
    %v1369 = vsel %vm1368, 0, %v1367
    %v1370 = vsub.s32 32, %v1369
    %v1371 = vshll.u32 %v1362, %v1369
    %v1372 = vshrl.u32 %v1354, %v1370
    %v1373 = vor.u32 %v1371, %v1372
    %v1374 = vsub.s32 4294967266, %v1369
    %v1375 = vadd.s32 %v1374, 127
    %v1376 = vshll.u32 %v1375, 23
    %v1377 = vor.u32 4788187, %v1376
    %v1378 = vand.u32 2147483647, %v1377
    %v1380 = vcvt.s32.f32 %v1373
    %v1381 = vmul.f32 %v1380, %v1378
    %v1382 = vxor.u32 %v1381, 2147483648
    %v1383 = vsel %vm1300, %v1382, %v1381
    %v1384 = vsub.s32 4, %v1360
    %v1385 = vsel %vm1300, %v1384, %v1360
    %v1386 = vsel %vm1299, %v135, %v1383
    %v1387 = vsel %vm1299, 0, %v1385
    %v1388 = vcosq.f32.pop %v1386
    %v1389 = vsinq.f32.pop %v1386
    %vm1390 = vweird.f32 %v135
    %v1391 = vand.u32 %v1387, 3
    %vm1392 = vcmp.lt.s32.totalorder %v1391, 2
    %vm1393 = vcmp.eq.s32.totalorder %v1391, 0
    %v1394 = vxor.u32 %v1389, 2147483648
    %v1395 = vsel %vm1393, %v1388, %v1394
    %vm1396 = vcmp.eq.s32.totalorder %v1391, 2
    %v1397 = vxor.u32 %v1388, 2147483648
    %v1398 = vsel %vm1396, %v1397, %v1389
    %v1399 = vsel %vm1392, %v1395, %v1398
    %v1400 = vsel %vm1390, nan, %v1399
    %v1401 = vand.u32 2147483647, %v139
    %vm1402 = vcmp.le.f32.partialorder %v1401, 0.7853982
    %vm1403 = vcmp.lt.s32.totalorder %v139, 0
    %v1404 = vand.u32 %v139, 2139095040
    %v1405 = vshrl.u32 %v1404, 23
    %v1406 = vsub.s32 %v1405, 127
    %v1407 = vand.u32 2147483647, %v139
    %v1408 = vand.u32 %v1407, 8388607
    %v1409 = vor.u32 %v1408, 8388608
    %v1410 = vsub.s32 0, %v1409
    %v1411 = vadd.s32 %v1406, 1
    %vm1412 = vcmp.gt.s32.totalorder %v1411, 0
    %v1413 = vsel %vm1412, %v1411, 0
    %v1414 = vshrl.u32 %v1413, 5
    %v1415 = vand.u32 %v1413, 31
    %v1416 = vsub.s32 32, %v1415
    %v1417 = vshrl.u32 683565275, %v1416
    %v1418 = vshll.u32 683565275, %v1415
    %v1419 = vshrl.u32 2475754826, %v1416
    %v1420 = vor.u32 %v1418, %v1419
    %v1421 = vshll.u32 2475754826, %v1415
    %v1422 = vshrl.u32 2131351028, %v1416
    %v1423 = vor.u32 %v1421, %v1422
    %v1424 = vshll.u32 2131351028, %v1415
    %v1425 = vshrl.u32 2102212464, %v1416
    %v1426 = vor.u32 %v1424, %v1425
    %v1427 = vshll.u32 2102212464, %v1415
    %v1428 = vshrl.u32 920167782, %v1416
    %v1429 = vor.u32 %v1427, %v1428
    %v1430 = vshll.u32 920167782, %v1415
    %v1431 = vshrl.u32 1326507024, %v1416
    %v1432 = vor.u32 %v1430, %v1431
    %vm1433 = vcmp.lt.s32.totalorder %v1414, 1
    %vm1434 = vcmp.lt.s32.totalorder %v1414, 2
    %vm1435 = vcmp.lt.s32.totalorder %v1414, 3
    %vm1436 = vcmp.lt.s32.totalorder %v1414, 4
    %v1437 = vsel %vm1433, %v1417, %v1420
    %v1438 = vsel %vm1436, %v1426, 2102212464
    %v1439 = vsel %vm1435, %v1423, %v1438
    %v1440 = vsel %vm1434, %v1437, %v1439
    %v1441 = vsel %vm1433, %v1420, %v1423
    %v1442 = vsel %vm1436, %v1429, 920167782
    %v1443 = vsel %vm1435, %v1426, %v1442
    %v1444 = vsel %vm1434, %v1441, %v1443
    %v1445 = vsel %vm1433, %v1423, %v1426
    %v1446 = vsel %vm1436, %v1432, 1326507024
    %v1447 = vsel %vm1435, %v1429, %v1446
    %v1448 = vsel %vm1434, %v1445, %v1447
    %v1449 = vshll.u32 %v1409, 8
    %v1450 = vmul.u32.u64.compose %v1449, %v1448
    %v1451 = vextract.low.u32 %v1450
    %v1452 = vextract.high.u32 %v1450
    %v1453 = vmul.u32.u64.compose %v1449, %v1444
    %v1454 = vextract.low.u32 %v1453
    %v1455 = vextract.high.u32 %v1453
    %v1456 = vmul.u32 %v1449, %v1440
    %v1457 = vadd.s32 %v1452, %v1454
    %vm1458 = vc.u32 %v1452, %v1454
    %v1459 = vadd.s32 %v1455, 1
    %v1460 = vsel %vm1458, %v1459, %v1455
    %v1461 = vadd.s32 %v1456, %v1460
    %v1462 = vadd.s32 %v1461, 536870912
    %v1463 = vshrl.u32 %v1462, 30
    %v1464 = vshll.u32 %v1463, 30
    %v1465 = vsub.s32 %v1461, %v1464
    %vm1466 = vcmp.lt.s32.totalorder %v1465, 0
    %v1467 = vsub.s32 0, %v1465
    %v1468 = vsel %vm1466, %v1467, %v1465
    %v1469 = vclz %v1468
    %v1470 = vsub.s32 %v1469, 2
    %vm1471 = vcmp.gt.s32.totalorder 0, %v1470
    %v1472 = vsel %vm1471, 0, %v1470
    %v1473 = vsub.s32 32, %v1472
    %v1474 = vshll.u32 %v1465, %v1472
    %v1475 = vshrl.u32 %v1457, %v1473
    %v1476 = vor.u32 %v1474, %v1475
    %v1477 = vsub.s32 4294967266, %v1472
    %v1478 = vadd.s32 %v1477, 127
    %v1479 = vshll.u32 %v1478, 23
    %v1480 = vor.u32 4788187, %v1479
    %v1481 = vand.u32 2147483647, %v1480
    %v1483 = vcvt.s32.f32 %v1476
    %v1484 = vmul.f32 %v1483, %v1481
    %v1485 = vxor.u32 %v1484, 2147483648
    %v1486 = vsel %vm1403, %v1485, %v1484
    %v1487 = vsub.s32 4, %v1463
    %v1488 = vsel %vm1403, %v1487, %v1463
    %v1489 = vsel %vm1402, %v139, %v1486
    %v1490 = vsel %vm1402, 0, %v1488
    %v1491 = vcosq.f32.pop %v1489
    %v1492 = vsinq.f32.pop %v1489
    %vm1493 = vweird.f32 %v139
    %v1494 = vand.u32 %v1490, 3
    %vm1495 = vcmp.lt.s32.totalorder %v1494, 2
    %vm1496 = vcmp.eq.s32.totalorder %v1494, 0
    %v1497 = vxor.u32 %v1492, 2147483648
    %v1498 = vsel %vm1496, %v1491, %v1497
    %vm1499 = vcmp.eq.s32.totalorder %v1494, 2
    %v1500 = vxor.u32 %v1491, 2147483648
    %v1501 = vsel %vm1499, %v1500, %v1492
    %v1502 = vsel %vm1495, %v1498, %v1501
    %v1503 = vsel %vm1493, nan, %v1502
    %v1504 = vand.u32 2147483647, %v141
    %vm1505 = vcmp.le.f32.partialorder %v1504, 0.7853982
    %vm1506 = vcmp.lt.s32.totalorder %v141, 0
    %v1507 = vand.u32 %v141, 2139095040
    %v1508 = vshrl.u32 %v1507, 23
    %v1509 = vsub.s32 %v1508, 127
    %v1510 = vand.u32 2147483647, %v141
    %v1511 = vand.u32 %v1510, 8388607
    %v1512 = vor.u32 %v1511, 8388608
    %v1513 = vsub.s32 0, %v1512
    %v1514 = vadd.s32 %v1509, 1
    %vm1515 = vcmp.gt.s32.totalorder %v1514, 0
    %v1516 = vsel %vm1515, %v1514, 0
    %v1517 = vshrl.u32 %v1516, 5
    %v1518 = vand.u32 %v1516, 31
    %v1519 = vsub.s32 32, %v1518
    %v1520 = vshrl.u32 683565275, %v1519
    %v1521 = vshll.u32 683565275, %v1518
    %v1522 = vshrl.u32 2475754826, %v1519
    %v1523 = vor.u32 %v1521, %v1522
    %v1524 = vshll.u32 2475754826, %v1518
    %v1525 = vshrl.u32 2131351028, %v1519
    %v1526 = vor.u32 %v1524, %v1525
    %v1527 = vshll.u32 2131351028, %v1518
    %v1528 = vshrl.u32 2102212464, %v1519
    %v1529 = vor.u32 %v1527, %v1528
    %v1530 = vshll.u32 2102212464, %v1518
    %v1531 = vshrl.u32 920167782, %v1519
    %v1532 = vor.u32 %v1530, %v1531
    %v1533 = vshll.u32 920167782, %v1518
    %v1534 = vshrl.u32 1326507024, %v1519
    %v1535 = vor.u32 %v1533, %v1534
    %vm1536 = vcmp.lt.s32.totalorder %v1517, 1
    %vm1537 = vcmp.lt.s32.totalorder %v1517, 2
    %vm1538 = vcmp.lt.s32.totalorder %v1517, 3
    %vm1539 = vcmp.lt.s32.totalorder %v1517, 4
    %v1540 = vsel %vm1536, %v1520, %v1523
    %v1541 = vsel %vm1539, %v1529, 2102212464
    %v1542 = vsel %vm1538, %v1526, %v1541
    %v1543 = vsel %vm1537, %v1540, %v1542
    %v1544 = vsel %vm1536, %v1523, %v1526
    %v1545 = vsel %vm1539, %v1532, 920167782
    %v1546 = vsel %vm1538, %v1529, %v1545
    %v1547 = vsel %vm1537, %v1544, %v1546
    %v1548 = vsel %vm1536, %v1526, %v1529
    %v1549 = vsel %vm1539, %v1535, 1326507024
    %v1550 = vsel %vm1538, %v1532, %v1549
    %v1551 = vsel %vm1537, %v1548, %v1550
    %v1552 = vshll.u32 %v1512, 8
    %v1553 = vmul.u32.u64.compose %v1552, %v1551
    %v1554 = vextract.low.u32 %v1553
    %v1555 = vextract.high.u32 %v1553
    %v1556 = vmul.u32.u64.compose %v1552, %v1547
    %v1557 = vextract.low.u32 %v1556
    %v1558 = vextract.high.u32 %v1556
    %v1559 = vmul.u32 %v1552, %v1543
    %v1560 = vadd.s32 %v1555, %v1557
    %vm1561 = vc.u32 %v1555, %v1557
    %v1562 = vadd.s32 %v1558, 1
    %v1563 = vsel %vm1561, %v1562, %v1558
    %v1564 = vadd.s32 %v1559, %v1563
    %v1565 = vadd.s32 %v1564, 536870912
    %v1566 = vshrl.u32 %v1565, 30
    %v1567 = vshll.u32 %v1566, 30
    %v1568 = vsub.s32 %v1564, %v1567
    %vm1569 = vcmp.lt.s32.totalorder %v1568, 0
    %v1570 = vsub.s32 0, %v1568
    %v1571 = vsel %vm1569, %v1570, %v1568
    %v1572 = vclz %v1571
    %v1573 = vsub.s32 %v1572, 2
    %vm1574 = vcmp.gt.s32.totalorder 0, %v1573
    %v1575 = vsel %vm1574, 0, %v1573
    %v1576 = vsub.s32 32, %v1575
    %v1577 = vshll.u32 %v1568, %v1575
    %v1578 = vshrl.u32 %v1560, %v1576
    %v1579 = vor.u32 %v1577, %v1578
    %v1580 = vsub.s32 4294967266, %v1575
    %v1581 = vadd.s32 %v1580, 127
    %v1582 = vshll.u32 %v1581, 23
    %v1583 = vor.u32 4788187, %v1582
    %v1584 = vand.u32 2147483647, %v1583
    %v1586 = vcvt.s32.f32 %v1579
    %v1587 = vmul.f32 %v1586, %v1584
    %v1588 = vxor.u32 %v1587, 2147483648
    %v1589 = vsel %vm1506, %v1588, %v1587
    %v1590 = vsub.s32 4, %v1566
    %v1591 = vsel %vm1506, %v1590, %v1566
    %v1592 = vsel %vm1505, %v141, %v1589
    %v1593 = vsel %vm1505, 0, %v1591
    %v1594 = vcosq.f32.pop %v1592
    %v1595 = vsinq.f32.pop %v1592
    %vm1596 = vweird.f32 %v141
    %v1597 = vand.u32 %v1593, 3
    %vm1598 = vcmp.lt.s32.totalorder %v1597, 2
    %vm1599 = vcmp.eq.s32.totalorder %v1597, 0
    %v1600 = vxor.u32 %v1595, 2147483648
    %v1601 = vsel %vm1599, %v1594, %v1600
    %vm1602 = vcmp.eq.s32.totalorder %v1597, 2
    %v1603 = vxor.u32 %v1594, 2147483648
    %v1604 = vsel %vm1602, %v1603, %v1595
    %v1605 = vsel %vm1598, %v1601, %v1604
    %v1606 = vsel %vm1596, nan, %v1605
    %v1607 = vand.u32 2147483647, %v145
    %vm1608 = vcmp.le.f32.partialorder %v1607, 0.7853982
    %vm1609 = vcmp.lt.s32.totalorder %v145, 0
    %v1610 = vand.u32 %v145, 2139095040
    %v1611 = vshrl.u32 %v1610, 23
    %v1612 = vsub.s32 %v1611, 127
    %v1613 = vand.u32 2147483647, %v145
    %v1614 = vand.u32 %v1613, 8388607
    %v1615 = vor.u32 %v1614, 8388608
    %v1616 = vsub.s32 0, %v1615
    %v1617 = vadd.s32 %v1612, 1
    %vm1618 = vcmp.gt.s32.totalorder %v1617, 0
    %v1619 = vsel %vm1618, %v1617, 0
    %v1620 = vshrl.u32 %v1619, 5
    %v1621 = vand.u32 %v1619, 31
    %v1622 = vsub.s32 32, %v1621
    %v1623 = vshrl.u32 683565275, %v1622
    %v1624 = vshll.u32 683565275, %v1621
    %v1625 = vshrl.u32 2475754826, %v1622
    %v1626 = vor.u32 %v1624, %v1625
    %v1627 = vshll.u32 2475754826, %v1621
    %v1628 = vshrl.u32 2131351028, %v1622
    %v1629 = vor.u32 %v1627, %v1628
    %v1630 = vshll.u32 2131351028, %v1621
    %v1631 = vshrl.u32 2102212464, %v1622
    %v1632 = vor.u32 %v1630, %v1631
    %v1633 = vshll.u32 2102212464, %v1621
    %v1634 = vshrl.u32 920167782, %v1622
    %v1635 = vor.u32 %v1633, %v1634
    %v1636 = vshll.u32 920167782, %v1621
    %v1637 = vshrl.u32 1326507024, %v1622
    %v1638 = vor.u32 %v1636, %v1637
    %vm1639 = vcmp.lt.s32.totalorder %v1620, 1
    %vm1640 = vcmp.lt.s32.totalorder %v1620, 2
    %vm1641 = vcmp.lt.s32.totalorder %v1620, 3
    %vm1642 = vcmp.lt.s32.totalorder %v1620, 4
    %v1643 = vsel %vm1639, %v1623, %v1626
    %v1644 = vsel %vm1642, %v1632, 2102212464
    %v1645 = vsel %vm1641, %v1629, %v1644
    %v1646 = vsel %vm1640, %v1643, %v1645
    %v1647 = vsel %vm1639, %v1626, %v1629
    %v1648 = vsel %vm1642, %v1635, 920167782
    %v1649 = vsel %vm1641, %v1632, %v1648
    %v1650 = vsel %vm1640, %v1647, %v1649
    %v1651 = vsel %vm1639, %v1629, %v1632
    %v1652 = vsel %vm1642, %v1638, 1326507024
    %v1653 = vsel %vm1641, %v1635, %v1652
    %v1654 = vsel %vm1640, %v1651, %v1653
    %v1655 = vshll.u32 %v1615, 8
    %v1656 = vmul.u32.u64.compose %v1655, %v1654
    %v1657 = vextract.low.u32 %v1656
    %v1658 = vextract.high.u32 %v1656
    %v1659 = vmul.u32.u64.compose %v1655, %v1650
    %v1660 = vextract.low.u32 %v1659
    %v1661 = vextract.high.u32 %v1659
    %v1662 = vmul.u32 %v1655, %v1646
    %v1663 = vadd.s32 %v1658, %v1660
    %vm1664 = vc.u32 %v1658, %v1660
    %v1665 = vadd.s32 %v1661, 1
    %v1666 = vsel %vm1664, %v1665, %v1661
    %v1667 = vadd.s32 %v1662, %v1666
    %v1668 = vadd.s32 %v1667, 536870912
    %v1669 = vshrl.u32 %v1668, 30
    %v1670 = vshll.u32 %v1669, 30
    %v1671 = vsub.s32 %v1667, %v1670
    %vm1672 = vcmp.lt.s32.totalorder %v1671, 0
    %v1673 = vsub.s32 0, %v1671
    %v1674 = vsel %vm1672, %v1673, %v1671
    %v1675 = vclz %v1674
    %v1676 = vsub.s32 %v1675, 2
    %vm1677 = vcmp.gt.s32.totalorder 0, %v1676
    %v1678 = vsel %vm1677, 0, %v1676
    %v1679 = vsub.s32 32, %v1678
    %v1680 = vshll.u32 %v1671, %v1678
    %v1681 = vshrl.u32 %v1663, %v1679
    %v1682 = vor.u32 %v1680, %v1681
    %v1683 = vsub.s32 4294967266, %v1678
    %v1684 = vadd.s32 %v1683, 127
    %v1685 = vshll.u32 %v1684, 23
    %v1686 = vor.u32 4788187, %v1685
    %v1687 = vand.u32 2147483647, %v1686
    %v1689 = vcvt.s32.f32 %v1682
    %v1690 = vmul.f32 %v1689, %v1687
    %v1691 = vxor.u32 %v1690, 2147483648
    %v1692 = vsel %vm1609, %v1691, %v1690
    %v1693 = vsub.s32 4, %v1669
    %v1694 = vsel %vm1609, %v1693, %v1669
    %v1695 = vsel %vm1608, %v145, %v1692
    %v1696 = vsel %vm1608, 0, %v1694
    %v1697 = vcosq.f32.pop %v1695
    %v1698 = vsinq.f32.pop %v1695
    %vm1699 = vweird.f32 %v145
    %v1700 = vand.u32 %v1696, 3
    %vm1701 = vcmp.lt.s32.totalorder %v1700, 2
    %vm1702 = vcmp.eq.s32.totalorder %v1700, 0
    %v1703 = vxor.u32 %v1698, 2147483648
    %v1704 = vsel %vm1702, %v1697, %v1703
    %vm1705 = vcmp.eq.s32.totalorder %v1700, 2
    %v1706 = vxor.u32 %v1697, 2147483648
    %v1707 = vsel %vm1705, %v1706, %v1698
    %v1708 = vsel %vm1701, %v1704, %v1707
    %v1709 = vsel %vm1699, nan, %v1708
    %v1710 = vand.u32 2147483647, %v147
    %vm1711 = vcmp.le.f32.partialorder %v1710, 0.7853982
    %vm1712 = vcmp.lt.s32.totalorder %v147, 0
    %v1713 = vand.u32 %v147, 2139095040
    %v1714 = vshrl.u32 %v1713, 23
    %v1715 = vsub.s32 %v1714, 127
    %v1716 = vand.u32 2147483647, %v147
    %v1717 = vand.u32 %v1716, 8388607
    %v1718 = vor.u32 %v1717, 8388608
    %v1719 = vsub.s32 0, %v1718
    %v1720 = vadd.s32 %v1715, 1
    %vm1721 = vcmp.gt.s32.totalorder %v1720, 0
    %v1722 = vsel %vm1721, %v1720, 0
    %v1723 = vshrl.u32 %v1722, 5
    %v1724 = vand.u32 %v1722, 31
    %v1725 = vsub.s32 32, %v1724
    %v1726 = vshrl.u32 683565275, %v1725
    %v1727 = vshll.u32 683565275, %v1724
    %v1728 = vshrl.u32 2475754826, %v1725
    %v1729 = vor.u32 %v1727, %v1728
    %v1730 = vshll.u32 2475754826, %v1724
    %v1731 = vshrl.u32 2131351028, %v1725
    %v1732 = vor.u32 %v1730, %v1731
    %v1733 = vshll.u32 2131351028, %v1724
    %v1734 = vshrl.u32 2102212464, %v1725
    %v1735 = vor.u32 %v1733, %v1734
    %v1736 = vshll.u32 2102212464, %v1724
    %v1737 = vshrl.u32 920167782, %v1725
    %v1738 = vor.u32 %v1736, %v1737
    %v1739 = vshll.u32 920167782, %v1724
    %v1740 = vshrl.u32 1326507024, %v1725
    %v1741 = vor.u32 %v1739, %v1740
    %vm1742 = vcmp.lt.s32.totalorder %v1723, 1
    %vm1743 = vcmp.lt.s32.totalorder %v1723, 2
    %vm1744 = vcmp.lt.s32.totalorder %v1723, 3
    %vm1745 = vcmp.lt.s32.totalorder %v1723, 4
    %v1746 = vsel %vm1742, %v1726, %v1729
    %v1747 = vsel %vm1745, %v1735, 2102212464
    %v1748 = vsel %vm1744, %v1732, %v1747
    %v1749 = vsel %vm1743, %v1746, %v1748
    %v1750 = vsel %vm1742, %v1729, %v1732
    %v1751 = vsel %vm1745, %v1738, 920167782
    %v1752 = vsel %vm1744, %v1735, %v1751
    %v1753 = vsel %vm1743, %v1750, %v1752
    %v1754 = vsel %vm1742, %v1732, %v1735
    %v1755 = vsel %vm1745, %v1741, 1326507024
    %v1756 = vsel %vm1744, %v1738, %v1755
    %v1757 = vsel %vm1743, %v1754, %v1756
    %v1758 = vshll.u32 %v1718, 8
    %v1759 = vmul.u32.u64.compose %v1758, %v1757
    %v1760 = vextract.low.u32 %v1759
    %v1761 = vextract.high.u32 %v1759
    %v1762 = vmul.u32.u64.compose %v1758, %v1753
    %v1763 = vextract.low.u32 %v1762
    %v1764 = vextract.high.u32 %v1762
    %v1765 = vmul.u32 %v1758, %v1749
    %v1766 = vadd.s32 %v1761, %v1763
    %vm1767 = vc.u32 %v1761, %v1763
    %v1768 = vadd.s32 %v1764, 1
    %v1769 = vsel %vm1767, %v1768, %v1764
    %v1770 = vadd.s32 %v1765, %v1769
    %v1771 = vadd.s32 %v1770, 536870912
    %v1772 = vshrl.u32 %v1771, 30
    %v1773 = vshll.u32 %v1772, 30
    %v1774 = vsub.s32 %v1770, %v1773
    %vm1775 = vcmp.lt.s32.totalorder %v1774, 0
    %v1776 = vsub.s32 0, %v1774
    %v1777 = vsel %vm1775, %v1776, %v1774
    %v1778 = vclz %v1777
    %v1779 = vsub.s32 %v1778, 2
    %vm1780 = vcmp.gt.s32.totalorder 0, %v1779
    %v1781 = vsel %vm1780, 0, %v1779
    %v1782 = vsub.s32 32, %v1781
    %v1783 = vshll.u32 %v1774, %v1781
    %v1784 = vshrl.u32 %v1766, %v1782
    %v1785 = vor.u32 %v1783, %v1784
    %v1786 = vsub.s32 4294967266, %v1781
    %v1787 = vadd.s32 %v1786, 127
    %v1788 = vshll.u32 %v1787, 23
    %v1789 = vor.u32 4788187, %v1788
    %v1790 = vand.u32 2147483647, %v1789
    %v1792 = vcvt.s32.f32 %v1785
    %v1793 = vmul.f32 %v1792, %v1790
    %v1794 = vxor.u32 %v1793, 2147483648
    %v1795 = vsel %vm1712, %v1794, %v1793
    %v1796 = vsub.s32 4, %v1772
    %v1797 = vsel %vm1712, %v1796, %v1772
    %v1798 = vsel %vm1711, %v147, %v1795
    %v1799 = vsel %vm1711, 0, %v1797
    %v1800 = vcosq.f32.pop %v1798
    %v1801 = vsinq.f32.pop %v1798
    %vm1802 = vweird.f32 %v147
    %v1803 = vand.u32 %v1799, 3
    %vm1804 = vcmp.lt.s32.totalorder %v1803, 2
    %vm1805 = vcmp.eq.s32.totalorder %v1803, 0
    %v1806 = vxor.u32 %v1801, 2147483648
    %v1807 = vsel %vm1805, %v1800, %v1806
    %vm1808 = vcmp.eq.s32.totalorder %v1803, 2
    %v1809 = vxor.u32 %v1800, 2147483648
    %v1810 = vsel %vm1808, %v1809, %v1801
    %v1811 = vsel %vm1804, %v1807, %v1810
    %v1812 = vsel %vm1802, nan, %v1811
    %v1813 = vsub.f32 1.0, %v1091
    %v1814 = vsub.f32 1.0, %v1194
    %v1815 = vsub.f32 1.0, %v1297
    %v1816 = vsub.f32 1.0, %v1400
    %v1817 = vsub.f32 1.0, %v1503
    %v1818 = vsub.f32 1.0, %v1606
    %v1819 = vsub.f32 1.0, %v1709
    %v1820 = vsub.f32 1.0, %v1812
    %1821 = vst [vmem:[#allocation2 + $0x40] sm:$0xff] %v1813
    %1822 = vst [vmem:[#allocation2 + $0x48] sm:$0xff] %v1814
    %1823 = vst [vmem:[#allocation2 + $0x50] sm:$0xff] %v1815
    %1824 = vst [vmem:[#allocation2 + $0x58] sm:$0xff] %v1816
    %1825 = vst [vmem:[#allocation2 + $0x60] sm:$0xff] %v1817
    %1826 = vst [vmem:[#allocation2 + $0x68] sm:$0xff] %v1818
    %1827 = vst [vmem:[#allocation2 + $0x70] sm:$0xff] %v1819
    %1828 = vst [vmem:[#allocation2 + $0x78] sm:$0xff] %v1820
    // Predicated region
    $region14: #{tpu_custom_call.1} parent=1 // pred_check
      _
    $region15: #{tpu_custom_call.1} parent=1 // pred_check_branch
      %1830 = sbr.rel (0) target = $region17
    $region16: #{tpu_custom_call.1} parent=1 // pred_region
      %s1832 = ssub.s32 2048, 2048
      %1833 = vsyncadd [#allocation3], %s1832
      %s1834 = sshll.u32 [#allocation2], 4
      %s1835 = int_to_ptr.vmem [resolvable:$true] %s1834
      %1840 = dma.vmem_to_hbm [thread:$0]  %s1835, 2048, %s3, [#allocation3], 256, 256, 16
    $region17: #{tpu_custom_call.1} parent=1 // pred_fallthru
      _
    // Predicated region
    $region18: #{tpu_custom_call.1} parent=1 // pred_check
      _
    $region19: #{tpu_custom_call.1} parent=1 // pred_check_branch
      %1842 = sbr.rel (0) target = $region21
    $region20: #{tpu_custom_call.1} parent=1 // pred_region
      %1843 = dma.done [#allocation3], 2048
    $region21: #{tpu_custom_call.1} parent=1 // pred_fallthru
      _
    %1844 = vsyncpa [#allocation3], 1

</llo_original>
